<compile_context>
chip_gen: v5e
topology: v5e:2x2
jax: 0.10.0
libtpu: 0.0.40
codegen_flags: <defaults>
</compile_context>

<pallas_src>
import jax
import jax.numpy as jnp
from jax.experimental import pallas as pl
from jax.experimental.pallas import tpu as pltpu

B = 8            # batch (demo size); must be a multiple of BJ
CIN = 8          # in_channels
COUT = 16        # out_channels
T = 16           # horizon_steps
COND_DIM = 32    # cond_dim
K = 5            # kernel_size
PAD = K // 2
GROUPS = 4       # n_groups
CG = COUT // GROUPS
EPS = 1e-5

BJ = 8           # batches per grid block -> BJ*T = 128 lanes (lane-dense)
BT = BJ * T      # 128

W0_COLS = K * CIN                                     # 40
W1_COLS = K * COUT                                    # 80
WSLAB_COLS = max(W0_COLS, W1_COLS, COND_DIM, CIN)     # 80


def _resblock_kernel(x_ref, cond_ref, w_ref, v_ref, c_ref, o_ref):
    f32 = jnp.float32

    # ---- carve the packed operand slabs (static, 8-aligned slices) ----
    w0 = w_ref[0 * COUT:1 * COUT, :W0_COLS]           # (COUT, K*CIN)
    w1 = w_ref[1 * COUT:2 * COUT, :W1_COLS]           # (COUT, K*COUT)
    wl = w_ref[2 * COUT:3 * COUT, :COND_DIM]          # (COUT, COND_DIM)
    wr = w_ref[3 * COUT:4 * COUT, :CIN]               # (COUT, CIN)

    v = v_ref[...]                                    # (COUT, 8)
    b0, g0, be0 = v[:, 0:1], v[:, 1:2], v[:, 2:3]
    b1, g1, be1 = v[:, 3:4], v[:, 4:5], v[:, 5:6]
    bl, br = v[:, 6:7], v[:, 7:8]

    sblk = c_ref[0:BT, :]                             # (BT, BT) per-batch-block col sums
    rbc = c_ref[BT:BT + BJ, :]                        # (BJ, BT) batch -> lane broadcast
    masks = c_ref[BT + BJ:BT + BJ + K, :]             # (K, BT)  'same'-pad validity per tap

    # ---- fold batch into the lane axis: (BJ, C, T) -> (C, BJ*T) ----
    x = jnp.concatenate([x_ref[b] for b in range(BJ)], axis=1)      # (CIN, BT)

    def mish(u):
        # u * tanh(softplus(u)); tanh(log1p(e)) == t / (t + 2), t = e*(e+2).
        e = jnp.exp(jnp.minimum(u, 20.0))
        t = e * (e + 2.0)
        y = u * t * pl.reciprocal(t + 2.0, approx=True)
        return jnp.where(u > 20.0, u, y)              # tail is identity to f32 precision

    def im2col(vv):
        # (C, BT) -> (K*C, BT): row k*C+c holds vv[c, . + (k-PAD)], zeroed where
        # the shifted index leaves the batch's own T-window ('same' zero pad).
        taps = []
        for k in range(K):
            s = k - PAD
            if s == 0:
                taps.append(vv)
            else:
                taps.append(pltpu.roll(vv, (-s) % BT, axis=1) * masks[k:k + 1, :])
        return jnp.concatenate(taps, axis=0)

    inv_n = 1.0 / float(CG * T)

    def groupnorm(h, gamma, beta):
        # One matmul gives per-(channel, batch-block) sums of h and h*h broadcast
        # over lanes; the group-of-CG channel averaging is sublane VPU/XLU work.
        stacked = jnp.concatenate([h, h * h], axis=0)                    # (2*COUT, BT)
        blocked = jnp.dot(stacked, sblk, preferred_element_type=f32)     # (2*COUT, BT)
        parts = []
        for g in range(2 * GROUPS):
            gsum = jnp.sum(blocked[g * CG:(g + 1) * CG], axis=0, keepdims=True)
            parts.append(jnp.broadcast_to(gsum, (CG, BT)))
        stats = jnp.concatenate(parts, axis=0) * inv_n                   # (2*COUT, BT)
        mean = stats[:COUT]
        var = jnp.maximum(stats[COUT:] - mean * mean, 0.0)               # clamp cancellation
        return (h - mean) * jax.lax.rsqrt(var + EPS) * gamma + beta

    # block[0]: Conv1d -> GroupNorm -> Mish   (conv = single im2col matmul)
    h = jnp.dot(w0, im2col(x), preferred_element_type=f32) + b0
    h = mish(groupnorm(h, g0, be0))

    # cond_encoder: Mish -> Linear, broadcast over T (stays lane-dense)
    e_small = jnp.einsum("oc,bc->ob", wl, mish(cond_ref[...]),
                         preferred_element_type=f32)                     # (COUT, BJ)
    h = h + jnp.dot(e_small, rbc, preferred_element_type=f32) + bl

    # block[1]: Conv1d -> GroupNorm -> Mish
    h = jnp.dot(w1, im2col(h), preferred_element_type=f32) + b1
    h = mish(groupnorm(h, g1, be1))

    # residual 1x1 conv, then unfold lanes back to the consumer layout
    h = h + jnp.dot(wr, x, preferred_element_type=f32) + br
    h = h.astype(o_ref.dtype)
    for b in range(BJ):
        o_ref[b] = h[:, b * T:(b + 1) * T]


def pack_params(p):
    """One-time parameter packing into three slabs (hoisted out of forward)."""
    # Weight slab: 4 row-groups of COUT rows, zero-padded to the widest segment.
    w0 = jnp.transpose(p["w0"], (0, 2, 1)).reshape(COUT, K * CIN)
    w1 = jnp.transpose(p["w1"], (0, 2, 1)).reshape(COUT, K * COUT)
    wl = p["wl"]
    wr = p["wr"][:, :, 0]
    wslab = jnp.zeros((4 * COUT, WSLAB_COLS), jnp.float32)
    wslab = wslab.at[0 * COUT:1 * COUT, :W0_COLS].set(w0)
    wslab = wslab.at[1 * COUT:2 * COUT, :W1_COLS].set(w1)
    wslab = wslab.at[2 * COUT:3 * COUT, :COND_DIM].set(wl)
    wslab = wslab.at[3 * COUT:4 * COUT, :CIN].set(wr)

    # Per-channel vector slab: one column per vector (order matches the kernel).
    vslab = jnp.stack([p["b0"], p["g0"], p["be0"],
                       p["b1"], p["g1"], p["be1"],
                       p["bl"], p["br"]], axis=1).astype(jnp.float32)    # (COUT, 8)

    # Constants slab: block-sum matrix, batch->lane broadcast matrix, conv masks.
    ll = jnp.arange(BT)
    sblk = (ll[:, None] // T == ll[None, :] // T).astype(jnp.float32)    # (BT, BT)
    rbc = (jnp.arange(BJ)[:, None] == ll[None, :] // T).astype(jnp.float32)  # (BJ, BT)
    tt = ll % T
    masks = jnp.stack(
        [((tt + (k - PAD) >= 0) & (tt + (k - PAD) < T)).astype(jnp.float32)
         for k in range(K)], axis=0)                                      # (K, BT)
    cslab = jnp.concatenate([sblk, rbc, masks], axis=0)                   # (BT+BJ+K, BT)

    return dict(wslab=wslab, vslab=vslab, cslab=cslab)


def residual_block_1d(x, cond, packed):
    batch = x.shape[0]
    assert batch % BJ == 0, "batch must be a multiple of BJ"
    nblk = batch // BJ
    return pl.pallas_call(
        _resblock_kernel,
        out_shape=jax.ShapeDtypeStruct((batch, COUT, T), jnp.float32),
        grid=(nblk,),
        in_specs=[
            pl.BlockSpec((BJ, CIN, T), lambda i: (i, 0, 0)),
            pl.BlockSpec((BJ, COND_DIM), lambda i: (i, 0)),
            pl.BlockSpec(packed["wslab"].shape, lambda i: (0, 0)),
            pl.BlockSpec(packed["vslab"].shape, lambda i: (0, 0)),
            pl.BlockSpec(packed["cslab"].shape, lambda i: (0, 0)),
        ],
        out_specs=pl.BlockSpec((BJ, COUT, T), lambda i: (i, 0, 0)),
        compiler_params=pltpu.CompilerParams(
            dimension_semantics=("parallel",)),
    )(x, cond, packed["wslab"], packed["vslab"], packed["cslab"])


def init_params(key):
    ks = jax.random.split(key, 12)
    s = 0.1
    return dict(
        w0=s * jax.random.normal(ks[0], (COUT, CIN, K), jnp.float32),
        b0=s * jax.random.normal(ks[1], (COUT,), jnp.float32),
        g0=1.0 + s * jax.random.normal(ks[2], (COUT,), jnp.float32),
        be0=s * jax.random.normal(ks[3], (COUT,), jnp.float32),
        w1=s * jax.random.normal(ks[4], (COUT, COUT, K), jnp.float32),
        b1=s * jax.random.normal(ks[5], (COUT,), jnp.float32),
        g1=1.0 + s * jax.random.normal(ks[6], (COUT,), jnp.float32),
        be1=s * jax.random.normal(ks[7], (COUT,), jnp.float32),
        wl=s * jax.random.normal(ks[8], (COUT, COND_DIM), jnp.float32),
        bl=s * jax.random.normal(ks[9], (COUT,), jnp.float32),
        wr=s * jax.random.normal(ks[10], (COUT, CIN, 1), jnp.float32),
        br=s * jax.random.normal(ks[11], (COUT,), jnp.float32),
    )


def ref_forward(x, cond, p):
    """Pure-JAX reference mirroring the PyTorch forward."""
    def conv1d(h, w, b):
        y = jax.lax.conv_general_dilated(
            h, w, window_strides=(1,), padding=[(PAD, PAD)],
            dimension_numbers=("NCH", "OIH", "NCH"))
        return y + b[None, :, None]

    def gn(h, gamma, beta):
        bn, c, tn = h.shape
        hg = h.reshape(bn, GROUPS, c // GROUPS, tn)
        mean = hg.mean(axis=(2, 3), keepdims=True)
        var = ((hg - mean) ** 2).mean(axis=(2, 3), keepdims=True)
        hn = ((hg - mean) / jnp.sqrt(var + EPS)).reshape(bn, c, tn)
        return hn * gamma[None, :, None] + beta[None, :, None]

    def mish(v):
        return v * jnp.tanh(jax.nn.softplus(v))

    h = mish(gn(conv1d(x, p["w0"], p["b0"]), p["g0"], p["be0"]))
    embed = mish(cond) @ p["wl"].T + p["bl"]
    h = h + embed[:, :, None]
    h = mish(gn(conv1d(h, p["w1"], p["b1"]), p["g1"], p["be1"]))
    res = jnp.einsum("oc,bct->bot", p["wr"][:, :, 0], x) + p["br"][None, :, None]
    return h + res


if __name__ == "__main__":
    key = jax.random.PRNGKey(0)
    kx, kc, kp = jax.random.split(key, 3)
    x = jax.random.normal(kx, (B, CIN, T), jnp.float32)
    cond = jax.random.normal(kc, (B, COND_DIM), jnp.float32)
    params = init_params(kp)

    packed = pack_params(params)          # hoisted, done once
    out = residual_block_1d(x, cond, packed)
    out = jax.block_until_ready(out)

    ref = ref_forward(x, cond, params)
    assert out.shape == (B, COUT, T), out.shape
    max_err = float(jnp.max(jnp.abs(out - ref)))
    assert max_err < 2e-2, f"max abs error too large: {max_err}"
    print("KERNEL_OK")
</pallas_src>

<mosaic_0001>
module attributes {stable_mosaic.version = 11 : i64} {
  func.func @_resblock_kernel(%arg0: i32, %arg1: memref<8x8x16xf32, #tpu.memory_space<vmem>>, %arg2: memref<8x32xf32, #tpu.memory_space<vmem>>, %arg3: memref<64x80xf32, #tpu.memory_space<vmem>>, %arg4: memref<16x8xf32, #tpu.memory_space<vmem>>, %arg5: memref<141x128xf32, #tpu.memory_space<vmem>>, %arg6: memref<8x16x16xf32, #tpu.memory_space<vmem>>) attributes {dimension_semantics = [#tpu.dimension_semantics<parallel>], iteration_bounds = array<i64: 1>, scalar_prefetch = 0 : i64, scratch_operands = 0 : i64, tpu.core_type = #tpu.core_type<tc>, window_params = [{transform_indices = @transform_0, window_bounds = array<i64: 8, 8, 16>}, {transform_indices = @transform_1, window_bounds = array<i64: 8, 32>}, {pipeline_mode = #tpu.pipeline_mode<synchronous>, transform_indices = @transform_2, window_bounds = array<i64: 64, 80>}, {pipeline_mode = #tpu.pipeline_mode<synchronous>, transform_indices = @transform_3, window_bounds = array<i64: 16, 8>}, {pipeline_mode = #tpu.pipeline_mode<synchronous>, transform_indices = @transform_4, window_bounds = array<i64: 141, 128>}, {transform_indices = @transform_5, window_bounds = array<i64: 8, 16, 16>}]} {
    %c0 = arith.constant 0 : index
    %c0_0 = arith.constant 0 : index
    %0 = vector.load %arg3[%c0, %c0_0] : memref<64x80xf32, #tpu.memory_space<vmem>>, vector<16x40xf32>
    %c16 = arith.constant 16 : index
    %c0_1 = arith.constant 0 : index
    %1 = vector.load %arg3[%c16, %c0_1] : memref<64x80xf32, #tpu.memory_space<vmem>>, vector<16x80xf32>
    %c32 = arith.constant 32 : index
    %c0_2 = arith.constant 0 : index
    %2 = vector.load %arg3[%c32, %c0_2] : memref<64x80xf32, #tpu.memory_space<vmem>>, vector<16x32xf32>
    %c48 = arith.constant 48 : index
    %c0_3 = arith.constant 0 : index
    %3 = vector.load %arg3[%c48, %c0_3] : memref<64x80xf32, #tpu.memory_space<vmem>>, vector<16x8xf32>
    %c0_4 = arith.constant 0 : index
    %c0_5 = arith.constant 0 : index
    %4 = vector.load %arg4[%c0_4, %c0_5] : memref<16x8xf32, #tpu.memory_space<vmem>>, vector<16x8xf32>
    %5 = vector.extract_strided_slice %4 {offsets = [0, 0], sizes = [16, 1], strides = [1, 1]} : vector<16x8xf32> to vector<16x1xf32>
    %6 = vector.extract_strided_slice %4 {offsets = [0, 1], sizes = [16, 1], strides = [1, 1]} : vector<16x8xf32> to vector<16x1xf32>
    %7 = vector.extract_strided_slice %4 {offsets = [0, 2], sizes = [16, 1], strides = [1, 1]} : vector<16x8xf32> to vector<16x1xf32>
    %8 = vector.extract_strided_slice %4 {offsets = [0, 3], sizes = [16, 1], strides = [1, 1]} : vector<16x8xf32> to vector<16x1xf32>
    %9 = vector.extract_strided_slice %4 {offsets = [0, 4], sizes = [16, 1], strides = [1, 1]} : vector<16x8xf32> to vector<16x1xf32>
    %10 = vector.extract_strided_slice %4 {offsets = [0, 5], sizes = [16, 1], strides = [1, 1]} : vector<16x8xf32> to vector<16x1xf32>
    %11 = vector.extract_strided_slice %4 {offsets = [0, 6], sizes = [16, 1], strides = [1, 1]} : vector<16x8xf32> to vector<16x1xf32>
    %12 = vector.extract_strided_slice %4 {offsets = [0, 7], sizes = [16, 1], strides = [1, 1]} : vector<16x8xf32> to vector<16x1xf32>
    %c0_6 = arith.constant 0 : index
    %c0_7 = arith.constant 0 : index
    %13 = vector.load %arg5[%c0_6, %c0_7] : memref<141x128xf32, #tpu.memory_space<vmem>>, vector<128x128xf32>
    %c128 = arith.constant 128 : index
    %c0_8 = arith.constant 0 : index
    %14 = vector.load %arg5[%c128, %c0_8] : memref<141x128xf32, #tpu.memory_space<vmem>>, vector<8x128xf32>
    %c136 = arith.constant 136 : index
    %c0_9 = arith.constant 0 : index
    %15 = vector.load %arg5[%c136, %c0_9] : memref<141x128xf32, #tpu.memory_space<vmem>>, vector<5x128xf32>
    %c0_10 = arith.constant 0 : index
    %c0_11 = arith.constant 0 : index
    %c0_12 = arith.constant 0 : index
    %16 = vector.load %arg1[%c0_10, %c0_11, %c0_12] : memref<8x8x16xf32, #tpu.memory_space<vmem>>, vector<1x8x16xf32>
    %17 = vector.shape_cast %16 : vector<1x8x16xf32> to vector<8x16xf32>
    %c1 = arith.constant 1 : index
    %c0_13 = arith.constant 0 : index
    %c0_14 = arith.constant 0 : index
    %18 = vector.load %arg1[%c1, %c0_13, %c0_14] : memref<8x8x16xf32, #tpu.memory_space<vmem>>, vector<1x8x16xf32>
    %19 = vector.shape_cast %18 : vector<1x8x16xf32> to vector<8x16xf32>
    %c2 = arith.constant 2 : index
    %c0_15 = arith.constant 0 : index
    %c0_16 = arith.constant 0 : index
    %20 = vector.load %arg1[%c2, %c0_15, %c0_16] : memref<8x8x16xf32, #tpu.memory_space<vmem>>, vector<1x8x16xf32>
    %21 = vector.shape_cast %20 : vector<1x8x16xf32> to vector<8x16xf32>
    %c3 = arith.constant 3 : index
    %c0_17 = arith.constant 0 : index
    %c0_18 = arith.constant 0 : index
    %22 = vector.load %arg1[%c3, %c0_17, %c0_18] : memref<8x8x16xf32, #tpu.memory_space<vmem>>, vector<1x8x16xf32>
    %23 = vector.shape_cast %22 : vector<1x8x16xf32> to vector<8x16xf32>
    %c4 = arith.constant 4 : index
    %c0_19 = arith.constant 0 : index
    %c0_20 = arith.constant 0 : index
    %24 = vector.load %arg1[%c4, %c0_19, %c0_20] : memref<8x8x16xf32, #tpu.memory_space<vmem>>, vector<1x8x16xf32>
    %25 = vector.shape_cast %24 : vector<1x8x16xf32> to vector<8x16xf32>
    %c5 = arith.constant 5 : index
    %c0_21 = arith.constant 0 : index
    %c0_22 = arith.constant 0 : index
    %26 = vector.load %arg1[%c5, %c0_21, %c0_22] : memref<8x8x16xf32, #tpu.memory_space<vmem>>, vector<1x8x16xf32>
    %27 = vector.shape_cast %26 : vector<1x8x16xf32> to vector<8x16xf32>
    %c6 = arith.constant 6 : index
    %c0_23 = arith.constant 0 : index
    %c0_24 = arith.constant 0 : index
    %28 = vector.load %arg1[%c6, %c0_23, %c0_24] : memref<8x8x16xf32, #tpu.memory_space<vmem>>, vector<1x8x16xf32>
    %29 = vector.shape_cast %28 : vector<1x8x16xf32> to vector<8x16xf32>
    %c7 = arith.constant 7 : index
    %c0_25 = arith.constant 0 : index
    %c0_26 = arith.constant 0 : index
    %30 = vector.load %arg1[%c7, %c0_25, %c0_26] : memref<8x8x16xf32, #tpu.memory_space<vmem>>, vector<1x8x16xf32>
    %31 = vector.shape_cast %30 : vector<1x8x16xf32> to vector<8x16xf32>
    %32 = tpu.concatenate %17, %19, %21, %23, %25, %27, %29, %31 in 1 : vector<8x16xf32>, vector<8x16xf32>, vector<8x16xf32>, vector<8x16xf32>, vector<8x16xf32>, vector<8x16xf32>, vector<8x16xf32>, vector<8x16xf32> -> vector<8x128xf32>
    %c2_i32 = arith.constant 2 : i32
    %33 = tpu.dynamic_rotate %32 by %c2_i32 dim 1 : vector<8x128xf32>, i32 -> vector<8x128xf32>
    %34 = vector.extract_strided_slice %15 {offsets = [0, 0], sizes = [1, 128], strides = [1, 1]} : vector<5x128xf32> to vector<1x128xf32>
    %35 = vector.broadcast %34 : vector<1x128xf32> to vector<8x128xf32>
    %36 = arith.mulf %33, %35 : vector<8x128xf32>
    %c1_i32 = arith.constant 1 : i32
    %37 = tpu.dynamic_rotate %32 by %c1_i32 dim 1 : vector<8x128xf32>, i32 -> vector<8x128xf32>
    %38 = vector.extract_strided_slice %15 {offsets = [1, 0], sizes = [1, 128], strides = [1, 1]} : vector<5x128xf32> to vector<1x128xf32>
    %39 = vector.broadcast %38 : vector<1x128xf32> to vector<8x128xf32>
    %40 = arith.mulf %37, %39 : vector<8x128xf32>
    %c127_i32 = arith.constant 127 : i32
    %41 = tpu.dynamic_rotate %32 by %c127_i32 dim 1 : vector<8x128xf32>, i32 -> vector<8x128xf32>
    %42 = vector.extract_strided_slice %15 {offsets = [3, 0], sizes = [1, 128], strides = [1, 1]} : vector<5x128xf32> to vector<1x128xf32>
    %43 = vector.broadcast %42 : vector<1x128xf32> to vector<8x128xf32>
    %44 = arith.mulf %41, %43 : vector<8x128xf32>
    %c126_i32 = arith.constant 126 : i32
    %45 = tpu.dynamic_rotate %32 by %c126_i32 dim 1 : vector<8x128xf32>, i32 -> vector<8x128xf32>
    %46 = vector.extract_strided_slice %15 {offsets = [4, 0], sizes = [1, 128], strides = [1, 1]} : vector<5x128xf32> to vector<1x128xf32>
    %47 = vector.broadcast %46 : vector<1x128xf32> to vector<8x128xf32>
    %48 = arith.mulf %45, %47 : vector<8x128xf32>
    %49 = tpu.concatenate %36, %40, %32, %44, %48 in 0 : vector<8x128xf32>, vector<8x128xf32>, vector<8x128xf32>, vector<8x128xf32>, vector<8x128xf32> -> vector<40x128xf32>
    %cst = arith.constant dense<0.000000e+00> : vector<16x128xf32>
    %50 = tpu.matmul %0, %49, %cst {dimension_numbers = #tpu.dot_dimension_numbers<[1], [0], [0], [1], [0, 0, 1, 1], [], []>} : vector<16x40xf32>, vector<40x128xf32>, vector<16x128xf32> -> vector<16x128xf32>
    %51 = vector.broadcast %5 : vector<16x1xf32> to vector<16x128xf32>
    %52 = arith.addf %50, %51 : vector<16x128xf32>
    %53 = arith.mulf %52, %52 : vector<16x128xf32>
    %54 = tpu.concatenate %52, %53 in 0 : vector<16x128xf32>, vector<16x128xf32> -> vector<32x128xf32>
    %cst_27 = arith.constant dense<0.000000e+00> : vector<32x128xf32>
    %55 = tpu.matmul %54, %13, %cst_27 {dimension_numbers = #tpu.dot_dimension_numbers<[1], [0], [0], [1], [0, 0, 1, 1], [], []>} : vector<32x128xf32>, vector<128x128xf32>, vector<32x128xf32> -> vector<32x128xf32>
    %56 = vector.extract_strided_slice %55 {offsets = [0, 0], sizes = [4, 128], strides = [1, 1]} : vector<32x128xf32> to vector<4x128xf32>
    %cst_28 = arith.constant dense<0.000000e+00> : vector<128xf32>
    %57 = vector.multi_reduction <add>, %56, %cst_28 [0] : vector<4x128xf32> to vector<128xf32>
    %58 = vector.shape_cast %57 : vector<128xf32> to vector<1x128xf32>
    %59 = vector.shape_cast %58 : vector<1x128xf32> to vector<1x128xf32>
    %60 = vector.broadcast %59 : vector<1x128xf32> to vector<4x128xf32>
    %61 = vector.extract_strided_slice %55 {offsets = [4, 0], sizes = [4, 128], strides = [1, 1]} : vector<32x128xf32> to vector<4x128xf32>
    %cst_29 = arith.constant dense<0.000000e+00> : vector<128xf32>
    %62 = vector.multi_reduction <add>, %61, %cst_29 [0] : vector<4x128xf32> to vector<128xf32>
    %63 = vector.shape_cast %62 : vector<128xf32> to vector<1x128xf32>
    %64 = vector.shape_cast %63 : vector<1x128xf32> to vector<1x128xf32>
    %65 = vector.broadcast %64 : vector<1x128xf32> to vector<4x128xf32>
    %66 = vector.extract_strided_slice %55 {offsets = [8, 0], sizes = [4, 128], strides = [1, 1]} : vector<32x128xf32> to vector<4x128xf32>
    %cst_30 = arith.constant dense<0.000000e+00> : vector<128xf32>
    %67 = vector.multi_reduction <add>, %66, %cst_30 [0] : vector<4x128xf32> to vector<128xf32>
    %68 = vector.shape_cast %67 : vector<128xf32> to vector<1x128xf32>
    %69 = vector.shape_cast %68 : vector<1x128xf32> to vector<1x128xf32>
    %70 = vector.broadcast %69 : vector<1x128xf32> to vector<4x128xf32>
    %71 = vector.extract_strided_slice %55 {offsets = [12, 0], sizes = [4, 128], strides = [1, 1]} : vector<32x128xf32> to vector<4x128xf32>
    %cst_31 = arith.constant dense<0.000000e+00> : vector<128xf32>
    %72 = vector.multi_reduction <add>, %71, %cst_31 [0] : vector<4x128xf32> to vector<128xf32>
    %73 = vector.shape_cast %72 : vector<128xf32> to vector<1x128xf32>
    %74 = vector.shape_cast %73 : vector<1x128xf32> to vector<1x128xf32>
    %75 = vector.broadcast %74 : vector<1x128xf32> to vector<4x128xf32>
    %76 = vector.extract_strided_slice %55 {offsets = [16, 0], sizes = [4, 128], strides = [1, 1]} : vector<32x128xf32> to vector<4x128xf32>
    %cst_32 = arith.constant dense<0.000000e+00> : vector<128xf32>
    %77 = vector.multi_reduction <add>, %76, %cst_32 [0] : vector<4x128xf32> to vector<128xf32>
    %78 = vector.shape_cast %77 : vector<128xf32> to vector<1x128xf32>
    %79 = vector.shape_cast %78 : vector<1x128xf32> to vector<1x128xf32>
    %80 = vector.broadcast %79 : vector<1x128xf32> to vector<4x128xf32>
    %81 = vector.extract_strided_slice %55 {offsets = [20, 0], sizes = [4, 128], strides = [1, 1]} : vector<32x128xf32> to vector<4x128xf32>
    %cst_33 = arith.constant dense<0.000000e+00> : vector<128xf32>
    %82 = vector.multi_reduction <add>, %81, %cst_33 [0] : vector<4x128xf32> to vector<128xf32>
    %83 = vector.shape_cast %82 : vector<128xf32> to vector<1x128xf32>
    %84 = vector.shape_cast %83 : vector<1x128xf32> to vector<1x128xf32>
    %85 = vector.broadcast %84 : vector<1x128xf32> to vector<4x128xf32>
    %86 = vector.extract_strided_slice %55 {offsets = [24, 0], sizes = [4, 128], strides = [1, 1]} : vector<32x128xf32> to vector<4x128xf32>
    %cst_34 = arith.constant dense<0.000000e+00> : vector<128xf32>
    %87 = vector.multi_reduction <add>, %86, %cst_34 [0] : vector<4x128xf32> to vector<128xf32>
    %88 = vector.shape_cast %87 : vector<128xf32> to vector<1x128xf32>
    %89 = vector.shape_cast %88 : vector<1x128xf32> to vector<1x128xf32>
    %90 = vector.broadcast %89 : vector<1x128xf32> to vector<4x128xf32>
    %91 = vector.extract_strided_slice %55 {offsets = [28, 0], sizes = [4, 128], strides = [1, 1]} : vector<32x128xf32> to vector<4x128xf32>
    %cst_35 = arith.constant dense<0.000000e+00> : vector<128xf32>
    %92 = vector.multi_reduction <add>, %91, %cst_35 [0] : vector<4x128xf32> to vector<128xf32>
    %93 = vector.shape_cast %92 : vector<128xf32> to vector<1x128xf32>
    %94 = vector.shape_cast %93 : vector<1x128xf32> to vector<1x128xf32>
    %95 = vector.broadcast %94 : vector<1x128xf32> to vector<4x128xf32>
    %96 = tpu.concatenate %60, %65, %70, %75, %80, %85, %90, %95 in 0 : vector<4x128xf32>, vector<4x128xf32>, vector<4x128xf32>, vector<4x128xf32>, vector<4x128xf32>, vector<4x128xf32>, vector<4x128xf32>, vector<4x128xf32> -> vector<32x128xf32>
    %cst_36 = arith.constant 1.562500e-02 : f32
    %97 = vector.broadcast %cst_36 : f32 to vector<32x128xf32>
    %98 = arith.mulf %96, %97 : vector<32x128xf32>
    %99 = vector.extract_strided_slice %98 {offsets = [0, 0], sizes = [16, 128], strides = [1, 1]} : vector<32x128xf32> to vector<16x128xf32>
    %100 = vector.extract_strided_slice %98 {offsets = [16, 0], sizes = [16, 128], strides = [1, 1]} : vector<32x128xf32> to vector<16x128xf32>
    %101 = arith.mulf %99, %99 : vector<16x128xf32>
    %102 = arith.subf %100, %101 : vector<16x128xf32>
    %cst_37 = arith.constant 0.000000e+00 : f32
    %103 = vector.broadcast %cst_37 : f32 to vector<16x128xf32>
    %104 = arith.maximumf %102, %103 : vector<16x128xf32>
    %105 = arith.subf %52, %99 : vector<16x128xf32>
    %cst_38 = arith.constant 9.99999974E-6 : f32
    %106 = vector.broadcast %cst_38 : f32 to vector<16x128xf32>
    %107 = arith.addf %104, %106 : vector<16x128xf32>
    %108 = math.rsqrt %107 : vector<16x128xf32>
    %109 = arith.mulf %105, %108 : vector<16x128xf32>
    %110 = vector.broadcast %6 : vector<16x1xf32> to vector<16x128xf32>
    %111 = arith.mulf %109, %110 : vector<16x128xf32>
    %112 = vector.broadcast %7 : vector<16x1xf32> to vector<16x128xf32>
    %113 = arith.addf %111, %112 : vector<16x128xf32>
    %cst_39 = arith.constant 2.000000e+01 : f32
    %114 = vector.broadcast %cst_39 : f32 to vector<16x128xf32>
    %115 = arith.minimumf %113, %114 : vector<16x128xf32>
    %116 = math.exp %115 : vector<16x128xf32>
    %cst_40 = arith.constant 2.000000e+00 : f32
    %117 = vector.broadcast %cst_40 : f32 to vector<16x128xf32>
    %118 = arith.addf %116, %117 : vector<16x128xf32>
    %119 = arith.mulf %116, %118 : vector<16x128xf32>
    %120 = arith.mulf %113, %119 : vector<16x128xf32>
    %cst_41 = arith.constant 2.000000e+00 : f32
    %121 = vector.broadcast %cst_41 : f32 to vector<16x128xf32>
    %122 = arith.addf %119, %121 : vector<16x128xf32>
    %123 = tpu.reciprocal %122 {approx = true} : vector<16x128xf32> -> vector<16x128xf32>
    %124 = arith.mulf %120, %123 : vector<16x128xf32>
    %cst_42 = arith.constant 2.000000e+01 : f32
    %125 = vector.broadcast %cst_42 : f32 to vector<16x128xf32>
    %126 = arith.cmpf ogt, %113, %125 : vector<16x128xf32>
    %127 = arith.select %126, %113, %124 : vector<16x128xi1>, vector<16x128xf32>
    %c0_43 = arith.constant 0 : index
    %c0_44 = arith.constant 0 : index
    %128 = vector.load %arg2[%c0_43, %c0_44] : memref<8x32xf32, #tpu.memory_space<vmem>>, vector<8x32xf32>
    %cst_45 = arith.constant 2.000000e+01 : f32
    %129 = vector.broadcast %cst_45 : f32 to vector<8x32xf32>
    %130 = arith.minimumf %128, %129 : vector<8x32xf32>
    %131 = math.exp %130 : vector<8x32xf32>
    %cst_46 = arith.constant 2.000000e+00 : f32
    %132 = vector.broadcast %cst_46 : f32 to vector<8x32xf32>
    %133 = arith.addf %131, %132 : vector<8x32xf32>
    %134 = arith.mulf %131, %133 : vector<8x32xf32>
    %135 = arith.mulf %128, %134 : vector<8x32xf32>
    %cst_47 = arith.constant 2.000000e+00 : f32
    %136 = vector.broadcast %cst_47 : f32 to vector<8x32xf32>
    %137 = arith.addf %134, %136 : vector<8x32xf32>
    %138 = tpu.reciprocal %137 {approx = true} : vector<8x32xf32> -> vector<8x32xf32>
    %139 = arith.mulf %135, %138 : vector<8x32xf32>
    %cst_48 = arith.constant 2.000000e+01 : f32
    %140 = vector.broadcast %cst_48 : f32 to vector<8x32xf32>
    %141 = arith.cmpf ogt, %128, %140 : vector<8x32xf32>
    %142 = arith.select %141, %128, %139 : vector<8x32xi1>, vector<8x32xf32>
    "tpu.trace_start"() <{level = 10 : i32, message = "oc,bc->ob"}> : () -> ()
    %cst_49 = arith.constant dense<0.000000e+00> : vector<16x8xf32>
    %143 = tpu.matmul %2, %142, %cst_49 {dimension_numbers = #tpu.dot_dimension_numbers<[1], [1], [0], [0], [0, 0, 1, 0], [], []>} : vector<16x32xf32>, vector<8x32xf32>, vector<16x8xf32> -> vector<16x8xf32>
    "tpu.trace_stop"() : () -> ()
    %cst_50 = arith.constant dense<0.000000e+00> : vector<16x128xf32>
    %144 = tpu.matmul %143, %14, %cst_50 {dimension_numbers = #tpu.dot_dimension_numbers<[1], [0], [0], [1], [0, 0, 1, 1], [], []>} : vector<16x8xf32>, vector<8x128xf32>, vector<16x128xf32> -> vector<16x128xf32>
    %145 = arith.addf %127, %144 : vector<16x128xf32>
    %146 = vector.broadcast %11 : vector<16x1xf32> to vector<16x128xf32>
    %147 = arith.addf %145, %146 : vector<16x128xf32>
    %c2_i32_51 = arith.constant 2 : i32
    %148 = tpu.dynamic_rotate %147 by %c2_i32_51 dim 1 : vector<16x128xf32>, i32 -> vector<16x128xf32>
    %149 = vector.extract_strided_slice %15 {offsets = [0, 0], sizes = [1, 128], strides = [1, 1]} : vector<5x128xf32> to vector<1x128xf32>
    %150 = vector.broadcast %149 : vector<1x128xf32> to vector<16x128xf32>
    %151 = arith.mulf %148, %150 : vector<16x128xf32>
    %c1_i32_52 = arith.constant 1 : i32
    %152 = tpu.dynamic_rotate %147 by %c1_i32_52 dim 1 : vector<16x128xf32>, i32 -> vector<16x128xf32>
    %153 = vector.extract_strided_slice %15 {offsets = [1, 0], sizes = [1, 128], strides = [1, 1]} : vector<5x128xf32> to vector<1x128xf32>
    %154 = vector.broadcast %153 : vector<1x128xf32> to vector<16x128xf32>
    %155 = arith.mulf %152, %154 : vector<16x128xf32>
    %c127_i32_53 = arith.constant 127 : i32
    %156 = tpu.dynamic_rotate %147 by %c127_i32_53 dim 1 : vector<16x128xf32>, i32 -> vector<16x128xf32>
    %157 = vector.extract_strided_slice %15 {offsets = [3, 0], sizes = [1, 128], strides = [1, 1]} : vector<5x128xf32> to vector<1x128xf32>
    %158 = vector.broadcast %157 : vector<1x128xf32> to vector<16x128xf32>
    %159 = arith.mulf %156, %158 : vector<16x128xf32>
    %c126_i32_54 = arith.constant 126 : i32
    %160 = tpu.dynamic_rotate %147 by %c126_i32_54 dim 1 : vector<16x128xf32>, i32 -> vector<16x128xf32>
    %161 = vector.extract_strided_slice %15 {offsets = [4, 0], sizes = [1, 128], strides = [1, 1]} : vector<5x128xf32> to vector<1x128xf32>
    %162 = vector.broadcast %161 : vector<1x128xf32> to vector<16x128xf32>
    %163 = arith.mulf %160, %162 : vector<16x128xf32>
    %164 = tpu.concatenate %151, %155, %147, %159, %163 in 0 : vector<16x128xf32>, vector<16x128xf32>, vector<16x128xf32>, vector<16x128xf32>, vector<16x128xf32> -> vector<80x128xf32>
    %cst_55 = arith.constant dense<0.000000e+00> : vector<16x128xf32>
    %165 = tpu.matmul %1, %164, %cst_55 {dimension_numbers = #tpu.dot_dimension_numbers<[1], [0], [0], [1], [0, 0, 1, 1], [], []>} : vector<16x80xf32>, vector<80x128xf32>, vector<16x128xf32> -> vector<16x128xf32>
    %166 = vector.broadcast %8 : vector<16x1xf32> to vector<16x128xf32>
    %167 = arith.addf %165, %166 : vector<16x128xf32>
    %168 = arith.mulf %167, %167 : vector<16x128xf32>
    %169 = tpu.concatenate %167, %168 in 0 : vector<16x128xf32>, vector<16x128xf32> -> vector<32x128xf32>
    %cst_56 = arith.constant dense<0.000000e+00> : vector<32x128xf32>
    %170 = tpu.matmul %169, %13, %cst_56 {dimension_numbers = #tpu.dot_dimension_numbers<[1], [0], [0], [1], [0, 0, 1, 1], [], []>} : vector<32x128xf32>, vector<128x128xf32>, vector<32x128xf32> -> vector<32x128xf32>
    %171 = vector.extract_strided_slice %170 {offsets = [0, 0], sizes = [4, 128], strides = [1, 1]} : vector<32x128xf32> to vector<4x128xf32>
    %cst_57 = arith.constant dense<0.000000e+00> : vector<128xf32>
    %172 = vector.multi_reduction <add>, %171, %cst_57 [0] : vector<4x128xf32> to vector<128xf32>
    %173 = vector.shape_cast %172 : vector<128xf32> to vector<1x128xf32>
    %174 = vector.shape_cast %173 : vector<1x128xf32> to vector<1x128xf32>
    %175 = vector.broadcast %174 : vector<1x128xf32> to vector<4x128xf32>
    %176 = vector.extract_strided_slice %170 {offsets = [4, 0], sizes = [4, 128], strides = [1, 1]} : vector<32x128xf32> to vector<4x128xf32>
    %cst_58 = arith.constant dense<0.000000e+00> : vector<128xf32>
    %177 = vector.multi_reduction <add>, %176, %cst_58 [0] : vector<4x128xf32> to vector<128xf32>
    %178 = vector.shape_cast %177 : vector<128xf32> to vector<1x128xf32>
    %179 = vector.shape_cast %178 : vector<1x128xf32> to vector<1x128xf32>
    %180 = vector.broadcast %179 : vector<1x128xf32> to vector<4x128xf32>
    %181 = vector.extract_strided_slice %170 {offsets = [8, 0], sizes = [4, 128], strides = [1, 1]} : vector<32x128xf32> to vector<4x128xf32>
    %cst_59 = arith.constant dense<0.000000e+00> : vector<128xf32>
    %182 = vector.multi_reduction <add>, %181, %cst_59 [0] : vector<4x128xf32> to vector<128xf32>
    %183 = vector.shape_cast %182 : vector<128xf32> to vector<1x128xf32>
    %184 = vector.shape_cast %183 : vector<1x128xf32> to vector<1x128xf32>
    %185 = vector.broadcast %184 : vector<1x128xf32> to vector<4x128xf32>
    %186 = vector.extract_strided_slice %170 {offsets = [12, 0], sizes = [4, 128], strides = [1, 1]} : vector<32x128xf32> to vector<4x128xf32>
    %cst_60 = arith.constant dense<0.000000e+00> : vector<128xf32>
    %187 = vector.multi_reduction <add>, %186, %cst_60 [0] : vector<4x128xf32> to vector<128xf32>
    %188 = vector.shape_cast %187 : vector<128xf32> to vector<1x128xf32>
    %189 = vector.shape_cast %188 : vector<1x128xf32> to vector<1x128xf32>
    %190 = vector.broadcast %189 : vector<1x128xf32> to vector<4x128xf32>
    %191 = vector.extract_strided_slice %170 {offsets = [16, 0], sizes = [4, 128], strides = [1, 1]} : vector<32x128xf32> to vector<4x128xf32>
    %cst_61 = arith.constant dense<0.000000e+00> : vector<128xf32>
    %192 = vector.multi_reduction <add>, %191, %cst_61 [0] : vector<4x128xf32> to vector<128xf32>
    %193 = vector.shape_cast %192 : vector<128xf32> to vector<1x128xf32>
    %194 = vector.shape_cast %193 : vector<1x128xf32> to vector<1x128xf32>
    %195 = vector.broadcast %194 : vector<1x128xf32> to vector<4x128xf32>
    %196 = vector.extract_strided_slice %170 {offsets = [20, 0], sizes = [4, 128], strides = [1, 1]} : vector<32x128xf32> to vector<4x128xf32>
    %cst_62 = arith.constant dense<0.000000e+00> : vector<128xf32>
    %197 = vector.multi_reduction <add>, %196, %cst_62 [0] : vector<4x128xf32> to vector<128xf32>
    %198 = vector.shape_cast %197 : vector<128xf32> to vector<1x128xf32>
    %199 = vector.shape_cast %198 : vector<1x128xf32> to vector<1x128xf32>
    %200 = vector.broadcast %199 : vector<1x128xf32> to vector<4x128xf32>
    %201 = vector.extract_strided_slice %170 {offsets = [24, 0], sizes = [4, 128], strides = [1, 1]} : vector<32x128xf32> to vector<4x128xf32>
    %cst_63 = arith.constant dense<0.000000e+00> : vector<128xf32>
    %202 = vector.multi_reduction <add>, %201, %cst_63 [0] : vector<4x128xf32> to vector<128xf32>
    %203 = vector.shape_cast %202 : vector<128xf32> to vector<1x128xf32>
    %204 = vector.shape_cast %203 : vector<1x128xf32> to vector<1x128xf32>
    %205 = vector.broadcast %204 : vector<1x128xf32> to vector<4x128xf32>
    %206 = vector.extract_strided_slice %170 {offsets = [28, 0], sizes = [4, 128], strides = [1, 1]} : vector<32x128xf32> to vector<4x128xf32>
    %cst_64 = arith.constant dense<0.000000e+00> : vector<128xf32>
    %207 = vector.multi_reduction <add>, %206, %cst_64 [0] : vector<4x128xf32> to vector<128xf32>
    %208 = vector.shape_cast %207 : vector<128xf32> to vector<1x128xf32>
    %209 = vector.shape_cast %208 : vector<1x128xf32> to vector<1x128xf32>
    %210 = vector.broadcast %209 : vector<1x128xf32> to vector<4x128xf32>
    %211 = tpu.concatenate %175, %180, %185, %190, %195, %200, %205, %210 in 0 : vector<4x128xf32>, vector<4x128xf32>, vector<4x128xf32>, vector<4x128xf32>, vector<4x128xf32>, vector<4x128xf32>, vector<4x128xf32>, vector<4x128xf32> -> vector<32x128xf32>
    %cst_65 = arith.constant 1.562500e-02 : f32
    %212 = vector.broadcast %cst_65 : f32 to vector<32x128xf32>
    %213 = arith.mulf %211, %212 : vector<32x128xf32>
    %214 = vector.extract_strided_slice %213 {offsets = [0, 0], sizes = [16, 128], strides = [1, 1]} : vector<32x128xf32> to vector<16x128xf32>
    %215 = vector.extract_strided_slice %213 {offsets = [16, 0], sizes = [16, 128], strides = [1, 1]} : vector<32x128xf32> to vector<16x128xf32>
    %216 = arith.mulf %214, %214 : vector<16x128xf32>
    %217 = arith.subf %215, %216 : vector<16x128xf32>
    %cst_66 = arith.constant 0.000000e+00 : f32
    %218 = vector.broadcast %cst_66 : f32 to vector<16x128xf32>
    %219 = arith.maximumf %217, %218 : vector<16x128xf32>
    %220 = arith.subf %167, %214 : vector<16x128xf32>
    %cst_67 = arith.constant 9.99999974E-6 : f32
    %221 = vector.broadcast %cst_67 : f32 to vector<16x128xf32>
    %222 = arith.addf %219, %221 : vector<16x128xf32>
    %223 = math.rsqrt %222 : vector<16x128xf32>
    %224 = arith.mulf %220, %223 : vector<16x128xf32>
    %225 = vector.broadcast %9 : vector<16x1xf32> to vector<16x128xf32>
    %226 = arith.mulf %224, %225 : vector<16x128xf32>
    %227 = vector.broadcast %10 : vector<16x1xf32> to vector<16x128xf32>
    %228 = arith.addf %226, %227 : vector<16x128xf32>
    %cst_68 = arith.constant 2.000000e+01 : f32
    %229 = vector.broadcast %cst_68 : f32 to vector<16x128xf32>
    %230 = arith.minimumf %228, %229 : vector<16x128xf32>
    %231 = math.exp %230 : vector<16x128xf32>
    %cst_69 = arith.constant 2.000000e+00 : f32
    %232 = vector.broadcast %cst_69 : f32 to vector<16x128xf32>
    %233 = arith.addf %231, %232 : vector<16x128xf32>
    %234 = arith.mulf %231, %233 : vector<16x128xf32>
    %235 = arith.mulf %228, %234 : vector<16x128xf32>
    %cst_70 = arith.constant 2.000000e+00 : f32
    %236 = vector.broadcast %cst_70 : f32 to vector<16x128xf32>
    %237 = arith.addf %234, %236 : vector<16x128xf32>
    %238 = tpu.reciprocal %237 {approx = true} : vector<16x128xf32> -> vector<16x128xf32>
    %239 = arith.mulf %235, %238 : vector<16x128xf32>
    %cst_71 = arith.constant 2.000000e+01 : f32
    %240 = vector.broadcast %cst_71 : f32 to vector<16x128xf32>
    %241 = arith.cmpf ogt, %228, %240 : vector<16x128xf32>
    %242 = arith.select %241, %228, %239 : vector<16x128xi1>, vector<16x128xf32>
    %cst_72 = arith.constant dense<0.000000e+00> : vector<16x128xf32>
    %243 = tpu.matmul %3, %32, %cst_72 {dimension_numbers = #tpu.dot_dimension_numbers<[1], [0], [0], [1], [0, 0, 1, 1], [], []>} : vector<16x8xf32>, vector<8x128xf32>, vector<16x128xf32> -> vector<16x128xf32>
    %244 = arith.addf %242, %243 : vector<16x128xf32>
    %245 = vector.broadcast %12 : vector<16x1xf32> to vector<16x128xf32>
    %246 = arith.addf %244, %245 : vector<16x128xf32>
    %247 = vector.extract_strided_slice %246 {offsets = [0, 0], sizes = [16, 16], strides = [1, 1]} : vector<16x128xf32> to vector<16x16xf32>
    %c0_73 = arith.constant 0 : index
    %c0_74 = arith.constant 0 : index
    %c0_75 = arith.constant 0 : index
    %248 = vector.load %arg6[%c0_73, %c0_74, %c0_75] : memref<8x16x16xf32, #tpu.memory_space<vmem>>, vector<1x16x16xf32>
    %249 = vector.shape_cast %248 : vector<1x16x16xf32> to vector<16x16xf32>
    %250 = vector.shape_cast %247 : vector<16x16xf32> to vector<1x16x16xf32>
    tpu.vector_store %arg6[%c0_73, %c0_74, %c0_75], %250 {strides = array<i32>} : memref<8x16x16xf32, #tpu.memory_space<vmem>>, vector<1x16x16xf32>,
    %251 = vector.extract_strided_slice %246 {offsets = [0, 16], sizes = [16, 16], strides = [1, 1]} : vector<16x128xf32> to vector<16x16xf32>
    %c1_76 = arith.constant 1 : index
    %c0_77 = arith.constant 0 : index
    %c0_78 = arith.constant 0 : index
    %252 = vector.load %arg6[%c1_76, %c0_77, %c0_78] : memref<8x16x16xf32, #tpu.memory_space<vmem>>, vector<1x16x16xf32>
    %253 = vector.shape_cast %252 : vector<1x16x16xf32> to vector<16x16xf32>
    %254 = vector.shape_cast %251 : vector<16x16xf32> to vector<1x16x16xf32>
    tpu.vector_store %arg6[%c1_76, %c0_77, %c0_78], %254 {strides = array<i32>} : memref<8x16x16xf32, #tpu.memory_space<vmem>>, vector<1x16x16xf32>,
    %255 = vector.extract_strided_slice %246 {offsets = [0, 32], sizes = [16, 16], strides = [1, 1]} : vector<16x128xf32> to vector<16x16xf32>
    %c2_79 = arith.constant 2 : index
    %c0_80 = arith.constant 0 : index
    %c0_81 = arith.constant 0 : index
    %256 = vector.load %arg6[%c2_79, %c0_80, %c0_81] : memref<8x16x16xf32, #tpu.memory_space<vmem>>, vector<1x16x16xf32>
    %257 = vector.shape_cast %256 : vector<1x16x16xf32> to vector<16x16xf32>
    %258 = vector.shape_cast %255 : vector<16x16xf32> to vector<1x16x16xf32>
    tpu.vector_store %arg6[%c2_79, %c0_80, %c0_81], %258 {strides = array<i32>} : memref<8x16x16xf32, #tpu.memory_space<vmem>>, vector<1x16x16xf32>,
    %259 = vector.extract_strided_slice %246 {offsets = [0, 48], sizes = [16, 16], strides = [1, 1]} : vector<16x128xf32> to vector<16x16xf32>
    %c3_82 = arith.constant 3 : index
    %c0_83 = arith.constant 0 : index
    %c0_84 = arith.constant 0 : index
    %260 = vector.load %arg6[%c3_82, %c0_83, %c0_84] : memref<8x16x16xf32, #tpu.memory_space<vmem>>, vector<1x16x16xf32>
    %261 = vector.shape_cast %260 : vector<1x16x16xf32> to vector<16x16xf32>
    %262 = vector.shape_cast %259 : vector<16x16xf32> to vector<1x16x16xf32>
    tpu.vector_store %arg6[%c3_82, %c0_83, %c0_84], %262 {strides = array<i32>} : memref<8x16x16xf32, #tpu.memory_space<vmem>>, vector<1x16x16xf32>,
    %263 = vector.extract_strided_slice %246 {offsets = [0, 64], sizes = [16, 16], strides = [1, 1]} : vector<16x128xf32> to vector<16x16xf32>
    %c4_85 = arith.constant 4 : index
    %c0_86 = arith.constant 0 : index
    %c0_87 = arith.constant 0 : index
    %264 = vector.load %arg6[%c4_85, %c0_86, %c0_87] : memref<8x16x16xf32, #tpu.memory_space<vmem>>, vector<1x16x16xf32>
    %265 = vector.shape_cast %264 : vector<1x16x16xf32> to vector<16x16xf32>
    %266 = vector.shape_cast %263 : vector<16x16xf32> to vector<1x16x16xf32>
    tpu.vector_store %arg6[%c4_85, %c0_86, %c0_87], %266 {strides = array<i32>} : memref<8x16x16xf32, #tpu.memory_space<vmem>>, vector<1x16x16xf32>,
    %267 = vector.extract_strided_slice %246 {offsets = [0, 80], sizes = [16, 16], strides = [1, 1]} : vector<16x128xf32> to vector<16x16xf32>
    %c5_88 = arith.constant 5 : index
    %c0_89 = arith.constant 0 : index
    %c0_90 = arith.constant 0 : index
    %268 = vector.load %arg6[%c5_88, %c0_89, %c0_90] : memref<8x16x16xf32, #tpu.memory_space<vmem>>, vector<1x16x16xf32>
    %269 = vector.shape_cast %268 : vector<1x16x16xf32> to vector<16x16xf32>
    %270 = vector.shape_cast %267 : vector<16x16xf32> to vector<1x16x16xf32>
    tpu.vector_store %arg6[%c5_88, %c0_89, %c0_90], %270 {strides = array<i32>} : memref<8x16x16xf32, #tpu.memory_space<vmem>>, vector<1x16x16xf32>,
    %271 = vector.extract_strided_slice %246 {offsets = [0, 96], sizes = [16, 16], strides = [1, 1]} : vector<16x128xf32> to vector<16x16xf32>
    %c6_91 = arith.constant 6 : index
    %c0_92 = arith.constant 0 : index
    %c0_93 = arith.constant 0 : index
    %272 = vector.load %arg6[%c6_91, %c0_92, %c0_93] : memref<8x16x16xf32, #tpu.memory_space<vmem>>, vector<1x16x16xf32>
    %273 = vector.shape_cast %272 : vector<1x16x16xf32> to vector<16x16xf32>
    %274 = vector.shape_cast %271 : vector<16x16xf32> to vector<1x16x16xf32>
    tpu.vector_store %arg6[%c6_91, %c0_92, %c0_93], %274 {strides = array<i32>} : memref<8x16x16xf32, #tpu.memory_space<vmem>>, vector<1x16x16xf32>,
    %275 = vector.extract_strided_slice %246 {offsets = [0, 112], sizes = [16, 16], strides = [1, 1]} : vector<16x128xf32> to vector<16x16xf32>
    %c7_94 = arith.constant 7 : index
    %c0_95 = arith.constant 0 : index
    %c0_96 = arith.constant 0 : index
    %276 = vector.load %arg6[%c7_94, %c0_95, %c0_96] : memref<8x16x16xf32, #tpu.memory_space<vmem>>, vector<1x16x16xf32>
    %277 = vector.shape_cast %276 : vector<1x16x16xf32> to vector<16x16xf32>
    %278 = vector.shape_cast %275 : vector<16x16xf32> to vector<1x16x16xf32>
    tpu.vector_store %arg6[%c7_94, %c0_95, %c0_96], %278 {strides = array<i32>} : memref<8x16x16xf32, #tpu.memory_space<vmem>>, vector<1x16x16xf32>,
    return
  }
  func.func @transform_0(%arg0: i32) -> (i32, i32, i32) {
    %c0_i32 = arith.constant 0 : i32
    %c0_i32_0 = arith.constant 0 : i32
    %c0_i32_1 = arith.constant 0 : i32
    return %arg0, %c0_i32, %c0_i32_0 : i32, i32, i32
  }
  func.func @transform_1(%arg0: i32) -> (i32, i32) {
    %c0_i32 = arith.constant 0 : i32
    %c0_i32_0 = arith.constant 0 : i32
    return %arg0, %c0_i32 : i32, i32
  }
  func.func @transform_2(%arg0: i32) -> (i32, i32) {
    %c0_i32 = arith.constant 0 : i32
    %c0_i32_0 = arith.constant 0 : i32
    %c0_i32_1 = arith.constant 0 : i32
    return %c0_i32, %c0_i32_0 : i32, i32
  }
  func.func @transform_3(%arg0: i32) -> (i32, i32) {
    %c0_i32 = arith.constant 0 : i32
    %c0_i32_0 = arith.constant 0 : i32
    %c0_i32_1 = arith.constant 0 : i32
    return %c0_i32, %c0_i32_0 : i32, i32
  }
  func.func @transform_4(%arg0: i32) -> (i32, i32) {
    %c0_i32 = arith.constant 0 : i32
    %c0_i32_0 = arith.constant 0 : i32
    %c0_i32_1 = arith.constant 0 : i32
    return %c0_i32, %c0_i32_0 : i32, i32
  }
  func.func @transform_5(%arg0: i32) -> (i32, i32, i32) {
    %c0_i32 = arith.constant 0 : i32
    %c0_i32_0 = arith.constant 0 : i32
    %c0_i32_1 = arith.constant 0 : i32
    return %arg0, %c0_i32, %c0_i32_0 : i32, i32, i32
  }
}

</mosaic_0001>

<llo_original>
// kernel: tpu_custom_call.1
$region0: #{tpu_custom_call.1}
  #allocation0 [shape = 'u32[]', space=smem, size = 0x4, offset = 0x4, fixed_abs, tag = 'smem constant byte address 0x4 - core index']
  #allocation1 [shape = 'u32[72,128]{1,0:T(1,128)}', space=vmem, size = 0x9000, scoped, tag = 'internal scratch']
  %s0 = inlined_call_operand.hbm [shape: f32[8,8,16], index: 0, kind: input, shape index: {}]
  %s1 = inlined_call_operand.vmem [shape: f32[8,32], index: 1, kind: input, shape index: {}]
  %s2 = inlined_call_operand.hbm [shape: f32[64,80], index: 2, kind: input, shape index: {}]
  %s3 = inlined_call_operand.vmem [shape: f32[16,8], index: 3, kind: input, shape index: {}]
  %s4 = inlined_call_operand.hbm [shape: f32[141,128], index: 4, kind: input, shape index: {}]
  %s5 = inlined_call_operand.hbm [shape: f32[8,16,16], index: 5, kind: output, shape index: {}]
  %s6 = sld [smem:[#allocation0]]
  $region42: #{tpu_custom_call.1} parent=0
    _
  %s8 = ssub.s32 1, %s6
  %s9 = scalar_select 0, %s8, %s6
  $region1: #{tpu_custom_call.1} parent=0
    #allocation2 [shape = 'u8[32768]{0}', space=vmem, size = 0x8000, scoped, tag = 'input window, operand 0, single buffered']
    #allocation3 [shape = 's32[1]{0}', space=sflag, size = 0x4, scoped, tag = 'scoped memory for tpu_custom_call.1']
    #allocation4 [shape = 's32[1]{0}', space=sflag, size = 0x4, scoped, tag = 'scoped memory for tpu_custom_call.1']
    #allocation5 [shape = 'u8[32768]{0}', space=vmem, size = 0x8000, scoped, tag = 'input window, operand 2, single buffered']
    #allocation6 [shape = 's32[1]{0}', space=sflag, size = 0x4, scoped, tag = 'scoped memory for tpu_custom_call.1']
    #allocation7 [shape = 'u8[73728]{0}', space=vmem, size = 0x12000, scoped, tag = 'input window, operand 4, single buffered']
    #allocation8 [shape = 'u8[65536]{0}', space=vmem, size = 0x10000, scoped, tag = 'output window, operand 0, single buffered']
    %10 = vsyncpa [#allocation3], 0
    %11 = vsyncpa [#allocation6], 0
    %12 = vsyncpa [#allocation4], 0
    // Predicated region
    $region2: #{tpu_custom_call.1} parent=1 // pred_check
      _
    $region3: #{tpu_custom_call.1} parent=1 // pred_check_branch
      %14 = sbr.rel (0) target = $region5
    $region4: #{tpu_custom_call.1} parent=1 // pred_region
      %16 = vsyncadd [#allocation3], 0
      %s17 = sshll.u32 %s0, 4
      %s18 = int_to_ptr.hbm [resolvable:$true] %s17
      %s19 = sshll.u32 [#allocation2], 4
      %s20 = int_to_ptr.vmem [resolvable:$true] %s19
      %25 = dma.hbm_to_vmem [thread:$0]  %s18, 1024, %s20, [#allocation3], 128, 128, 8
    $region5: #{tpu_custom_call.1} parent=1 // pred_fallthru
      _
    // Predicated region
    $region6: #{tpu_custom_call.1} parent=1 // pred_check
      _
    $region7: #{tpu_custom_call.1} parent=1 // pred_check_branch
      %27 = sbr.rel (0) target = $region9
    $region8: #{tpu_custom_call.1} parent=1 // pred_region
      _
    $region9: #{tpu_custom_call.1} parent=1 // pred_fallthru
      _
    // Predicated region
    $region10: #{tpu_custom_call.1} parent=1 // pred_check
      _
    $region11: #{tpu_custom_call.1} parent=1 // pred_check_branch
      %29 = sbr.rel (0) target = $region13
    $region12: #{tpu_custom_call.1} parent=1 // pred_region
      %31 = vsyncadd [#allocation6], 0
      %s32 = sshll.u32 %s2, 4
      %s33 = int_to_ptr.hbm [resolvable:$true] %s32
      %s34 = sshll.u32 [#allocation5], 4
      %s35 = int_to_ptr.vmem [resolvable:$true] %s34
      %40 = dma.hbm_to_vmem [thread:$0]  %s33, 1024, %s35, [#allocation6], 128, 128, 8
    $region13: #{tpu_custom_call.1} parent=1 // pred_fallthru
      _
    // Predicated region
    $region14: #{tpu_custom_call.1} parent=1 // pred_check
      _
    $region15: #{tpu_custom_call.1} parent=1 // pred_check_branch
      %42 = sbr.rel (0) target = $region17
    $region16: #{tpu_custom_call.1} parent=1 // pred_region
      _
    $region17: #{tpu_custom_call.1} parent=1 // pred_fallthru
      _
    // Predicated region
    $region18: #{tpu_custom_call.1} parent=1 // pred_check
      _
    $region19: #{tpu_custom_call.1} parent=1 // pred_check_branch
      %44 = sbr.rel (0) target = $region21
    $region20: #{tpu_custom_call.1} parent=1 // pred_region
      %46 = vsyncadd [#allocation6], 0
      %s47 = sshll.u32 %s4, 4
      %s48 = int_to_ptr.hbm [resolvable:$true] %s47
      %s49 = sshll.u32 [#allocation7], 4
      %s50 = int_to_ptr.vmem [resolvable:$true] %s49
      %55 = dma.hbm_to_vmem [thread:$0]  %s48, 2304, %s50, [#allocation6], 128, 128, 8
    $region21: #{tpu_custom_call.1} parent=1 // pred_fallthru
      _
    // Predicated region
    $region22: #{tpu_custom_call.1} parent=1 // pred_check
      _
    $region23: #{tpu_custom_call.1} parent=1 // pred_check_branch
      %57 = sbr.rel (0) target = $region25
    $region24: #{tpu_custom_call.1} parent=1 // pred_region
      %59 = dma.done [#allocation3], 1024
    $region25: #{tpu_custom_call.1} parent=1 // pred_fallthru
      _
    // Predicated region
    $region26: #{tpu_custom_call.1} parent=1 // pred_check
      _
    $region27: #{tpu_custom_call.1} parent=1 // pred_check_branch
      %61 = sbr.rel (0) target = $region29
    $region28: #{tpu_custom_call.1} parent=1 // pred_region
      %63 = dma.done [#allocation6], 1024
    $region29: #{tpu_custom_call.1} parent=1 // pred_fallthru
      _
    // Predicated region
    $region30: #{tpu_custom_call.1} parent=1 // pred_check
      _
    $region31: #{tpu_custom_call.1} parent=1 // pred_check_branch
      %65 = sbr.rel (0) target = $region33
    $region32: #{tpu_custom_call.1} parent=1 // pred_region
      %67 = dma.done [#allocation6], 2304
    $region33: #{tpu_custom_call.1} parent=1 // pred_fallthru
      _
    %v68 = vld [vmem:[#allocation5] sm:$0xff]
    %v69 = vld [vmem:[#allocation5 + $0x8] sm:$0xff]
    %v70 = vld [vmem:[#allocation5 + $0x10] sm:$0xff]
    %v71 = vld [vmem:[#allocation5 + $0x18] sm:$0xff]
    %v72 = vld [vmem:[#allocation5 + $0x20] sm:$0xff]
    %v73 = vld [vmem:[#allocation5 + $0x28] sm:$0xff]
    %v74 = vld [vmem:[#allocation5 + $0x30] sm:$0xff]
    %v75 = vld [vmem:[#allocation5 + $0x38] sm:$0xff]
    %v76 = vld [vmem:[%s3] sm:$0xff]
    %v77 = vld [vmem:[%s3 + $0x8] sm:$0xff]
    %v78 = vld [vmem:[#allocation7] sm:$0xff]
    %v79 = vld [vmem:[#allocation7 + $0x8] sm:$0xff]
    %v80 = vld [vmem:[#allocation7 + $0x10] sm:$0xff]
    %v81 = vld [vmem:[#allocation7 + $0x18] sm:$0xff]
    %v82 = vld [vmem:[#allocation7 + $0x20] sm:$0xff]
    %v83 = vld [vmem:[#allocation7 + $0x28] sm:$0xff]
    %v84 = vld [vmem:[#allocation7 + $0x30] sm:$0xff]
    %v85 = vld [vmem:[#allocation7 + $0x38] sm:$0xff]
    %v86 = vld [vmem:[#allocation7 + $0x40] sm:$0xff]
    %v87 = vld [vmem:[#allocation7 + $0x48] sm:$0xff]
    %v88 = vld [vmem:[#allocation7 + $0x50] sm:$0xff]
    %v89 = vld [vmem:[#allocation7 + $0x58] sm:$0xff]
    %v90 = vld [vmem:[#allocation7 + $0x60] sm:$0xff]
    %v91 = vld [vmem:[#allocation7 + $0x68] sm:$0xff]
    %v92 = vld [vmem:[#allocation7 + $0x70] sm:$0xff]
    %v93 = vld [vmem:[#allocation7 + $0x78] sm:$0xff]
    %v94 = vld [vmem:[#allocation7 + $0x80] sm:$0xff]
    %v95 = vld [vmem:[#allocation7 + $0x88] sm:$0x1f]
    %v96 = vld [vmem:[#allocation2] sm:$0xff]
    %s97 = scalar_lea.vmem [#allocation2], 8
    %v98 = vld [vmem:[%s97] sm:$0xff]
    %s99 = scalar_lea.vmem [#allocation2], 16
    %v100 = vld [vmem:[%s99] sm:$0xff]
    %s101 = scalar_lea.vmem [#allocation2], 24
    %v102 = vld [vmem:[%s101] sm:$0xff]
    %s103 = scalar_lea.vmem [#allocation2], 32
    %v104 = vld [vmem:[%s103] sm:$0xff]
    %s105 = scalar_lea.vmem [#allocation2], 40
    %v106 = vld [vmem:[%s105] sm:$0xff]
    %s107 = scalar_lea.vmem [#allocation2], 48
    %v108 = vld [vmem:[%s107] sm:$0xff]
    %s109 = scalar_lea.vmem [#allocation2], 56
    %v110 = vld [vmem:[%s109] sm:$0xff]
    %112 = vrot.lane.b32.xlu0 %v98, 16
    %v113 = vpop.permute.xlu0 %112
    %116 = vrot.lane.b32.xlu0 %v100, 32
    %v117 = vpop.permute.xlu0 %116
    %120 = vrot.lane.b32.xlu0 %v102, 48
    %v121 = vpop.permute.xlu0 %120
    %124 = vrot.lane.b32.xlu0 %v104, 64
    %v125 = vpop.permute.xlu0 %124
    %128 = vrot.lane.b32.xlu0 %v106, 80
    %v129 = vpop.permute.xlu0 %128
    %132 = vrot.lane.b32.xlu0 %v108, 96
    %v133 = vpop.permute.xlu0 %132
    %136 = vrot.lane.b32.xlu0 %v110, 112
    %v137 = vpop.permute.xlu0 %136
    %vm139 = vcmask 130048
    %v140 = vsel %vm139, %v96, %v113
    %vm141 = vcmask 261120
    %v142 = vsel %vm141, %v140, %v117
    %vm143 = vcmask 392192
    %v144 = vsel %vm143, %v142, %v121
    %vm145 = vcmask 523264
    %v146 = vsel %vm145, %v144, %v125
    %vm147 = vcmask 654336
    %v148 = vsel %vm147, %v146, %v129
    %vm149 = vcmask 785408
    %v150 = vsel %vm149, %v148, %v133
    %vm151 = vcmask 916480
    %v152 = vsel %vm151, %v150, %v137
    %153 = vrot.lane.b32.xlu0 %v152, 2
    %v154 = vpop.permute.xlu0 %153
    %v155 = vperm.slane %v95, 0
    %v156 = vmul.f32 %v154, %v155
    %157 = vrot.lane.b32.xlu0 %v152, 1
    %v158 = vpop.permute.xlu0 %157
    %v159 = vperm.slane %v95, 1
    %v160 = vmul.f32 %v158, %v159
    %161 = vrot.lane.b32.xlu0 %v152, 127
    %v162 = vpop.permute.xlu0 %161
    %v163 = vperm.slane %v95, 3
    %v164 = vmul.f32 %v162, %v163
    %165 = vrot.lane.b32.xlu0 %v152, 126
    %v166 = vpop.permute.xlu0 %165
    %v167 = vperm.slane %v95, 4
    %v168 = vmul.f32 %v166, %v167
    %170 = vset.pattern.permute.xlu0 0
    %171 = vperm.xlu0 %170, %v76
    %v172 = vpop.permute.xlu0 %171
    %175 = vset.pattern.permute.xlu0 0
    %176 = vperm.xlu0 %175, %v77
    %v177 = vpop.permute.xlu0 %176
    %vm179 = vcmask 326656
    %v181 = vsel %vm179, %v68, 0
    %v184 = vsel %vm179, %v69, 0
    %186 = vmatpush.msra.mxu0 0.0
    %187 = vmatpush.msra.mxu0 0.0
    %188 = vmatpush.msra.mxu0 0.0
    %189 = vmatpush.msra.mxu0 0.0
    %190 = vmatpush.msra.mxu0 0.0
    %191 = vmatpush.msra.mxu0 0.0
    %192 = vmatpush.msra.mxu0 0.0
    %193 = vmatpush.msra.mxu0 0.0
    %194 = vmatpush.msra.mxu0 0.0
    %195 = vmatpush.msra.mxu0 0.0
    %196 = vmatpush.msra.mxu0 0.0
    %197 = vmatpush.msra.mxu0 %v168
    %198 = vmatpush.msra.mxu0 %v164
    %199 = vmatpush.msra.mxu0 %v152
    %200 = vmatpush.msra.mxu0 %v160
    %201 = vmatpush.msra.mxu0 %v156
    %202 = vmatmul.f32.gmra.mxu0 %v181
    %v203 = vpop.f32.mrf.mxu0
    %v204 = vadd.f32 %v172, %v203
    %205 = vmatmul.f32.gmra.mxu0 %v184
    %v206 = vpop.f32.mrf.mxu0
    %v207 = vadd.f32 %v177, %v206
    %208 = vdwg.mxu0
    %v209 = vmul.f32 %v204, %v204
    %v210 = vmul.f32 %v207, %v207
    %211 = vmatpush.msra.mxu0 %v93
    %212 = vmatpush.msra.mxu0 %v92
    %213 = vmatpush.msra.mxu0 %v91
    %214 = vmatpush.msra.mxu0 %v90
    %215 = vmatpush.msra.mxu0 %v89
    %216 = vmatpush.msra.mxu0 %v88
    %217 = vmatpush.msra.mxu0 %v87
    %218 = vmatpush.msra.mxu0 %v86
    %219 = vmatpush.msra.mxu0 %v85
    %220 = vmatpush.msra.mxu0 %v84
    %221 = vmatpush.msra.mxu0 %v83
    %222 = vmatpush.msra.mxu0 %v82
    %223 = vmatpush.msra.mxu0 %v81
    %224 = vmatpush.msra.mxu0 %v80
    %225 = vmatpush.msra.mxu0 %v79
    %226 = vmatpush.msra.mxu0 %v78
    %227 = vmatmul.f32.gmra.mxu0 %v204
    %v228 = vpop.f32.mrf.mxu0
    %v229 = vadd.f32 0.0, %v228
    %230 = vmatmul.f32.gmra.mxu0 %v207
    %v231 = vpop.f32.mrf.mxu0
    %v232 = vadd.f32 0.0, %v231
    %233 = vmatmul.f32.gmra.mxu0 %v209
    %v234 = vpop.f32.mrf.mxu0
    %v235 = vadd.f32 0.0, %v234
    %236 = vmatmul.f32.gmra.mxu0 %v210
    %v237 = vpop.f32.mrf.mxu0
    %v238 = vadd.f32 0.0, %v237
    %239 = vdwg.mxu0
    %vm240 = vcmask 1043456
    %v241 = vsel %vm240, %v229, 0.0
    %v242 = vrot.slane %v241, 4
    %v243 = vadd.f32 %v241, %v242
    %v244 = vrot.slane %v243, 2
    %v245 = vadd.f32 %v243, %v244
    %v246 = vrot.slane %v245, 1
    %v247 = vadd.f32 %v245, %v246
    %v249 = vrot.slane %v229, 4
    %v251 = vsel %vm240, %v249, 0.0
    %v252 = vrot.slane %v251, 4
    %v253 = vadd.f32 %v251, %v252
    %v254 = vrot.slane %v253, 2
    %v255 = vadd.f32 %v253, %v254
    %v256 = vrot.slane %v255, 1
    %v257 = vadd.f32 %v255, %v256
    %v258 = vsel %vm240, %v232, 0.0
    %v259 = vrot.slane %v258, 4
    %v260 = vadd.f32 %v258, %v259
    %v261 = vrot.slane %v260, 2
    %v262 = vadd.f32 %v260, %v261
    %v263 = vrot.slane %v262, 1
    %v264 = vadd.f32 %v262, %v263
    %v266 = vrot.slane %v232, 4
    %v268 = vsel %vm240, %v266, 0.0
    %v269 = vrot.slane %v268, 4
    %v270 = vadd.f32 %v268, %v269
    %v271 = vrot.slane %v270, 2
    %v272 = vadd.f32 %v270, %v271
    %v273 = vrot.slane %v272, 1
    %v274 = vadd.f32 %v272, %v273
    %v275 = vsel %vm240, %v235, 0.0
    %v276 = vrot.slane %v275, 4
    %v277 = vadd.f32 %v275, %v276
    %v278 = vrot.slane %v277, 2
    %v279 = vadd.f32 %v277, %v278
    %v280 = vrot.slane %v279, 1
    %v281 = vadd.f32 %v279, %v280
    %v283 = vrot.slane %v235, 4
    %v285 = vsel %vm240, %v283, 0.0
    %v286 = vrot.slane %v285, 4
    %v287 = vadd.f32 %v285, %v286
    %v288 = vrot.slane %v287, 2
    %v289 = vadd.f32 %v287, %v288
    %v290 = vrot.slane %v289, 1
    %v291 = vadd.f32 %v289, %v290
    %v292 = vsel %vm240, %v238, 0.0
    %v293 = vrot.slane %v292, 4
    %v294 = vadd.f32 %v292, %v293
    %v295 = vrot.slane %v294, 2
    %v296 = vadd.f32 %v294, %v295
    %v297 = vrot.slane %v296, 1
    %v298 = vadd.f32 %v296, %v297
    %v300 = vrot.slane %v238, 4
    %v302 = vsel %vm240, %v300, 0.0
    %v303 = vrot.slane %v302, 4
    %v304 = vadd.f32 %v302, %v303
    %v305 = vrot.slane %v304, 2
    %v306 = vadd.f32 %v304, %v305
    %v307 = vrot.slane %v306, 1
    %v308 = vadd.f32 %v306, %v307
    %v309 = vsel %vm240, %v247, %v257
    %v310 = vsel %vm240, %v264, %v274
    %v311 = vsel %vm240, %v281, %v291
    %v312 = vsel %vm240, %v298, %v308
    %v313 = vmul.f32 %v309, 0.015625
    %v314 = vmul.f32 %v310, 0.015625
    %v315 = vmul.f32 %v311, 0.015625
    %v316 = vmul.f32 %v312, 0.015625
    %v317 = vmul.f32 %v313, %v313
    %v318 = vmul.f32 %v314, %v314
    %v319 = vsub.f32 %v315, %v317
    %v320 = vsub.f32 %v316, %v318
    %v321 = vmax.f32 %v319, 0.0
    %v322 = vmax.f32 %v320, 0.0
    %v323 = vsub.f32 %v204, %v313
    %v324 = vsub.f32 %v207, %v314
    %v325 = vadd.f32 %v321, 1e-05
    %v326 = vadd.f32 %v322, 1e-05
    %v327 = vrsqrt.pop %v325
    %v328 = vmul.f32 %v327, %v325
    %v329 = vmul.f32 %v328, %v327
    %v330 = vmul.f32 0.5, %v329
    %v331 = vsub.f32 1.5, %v330
    %v332 = vmul.f32 %v327, %v331
    %vm333 = vweird.f32 %v325
    %vm334 = vweird.f32 %v327
    %vm335 = vmor %vm333, %vm334
    %v336 = vsel %vm335, %v327, %v332
    %v337 = vrsqrt.pop %v326
    %v338 = vmul.f32 %v337, %v326
    %v339 = vmul.f32 %v338, %v337
    %v340 = vmul.f32 0.5, %v339
    %v341 = vsub.f32 1.5, %v340
    %v342 = vmul.f32 %v337, %v341
    %vm343 = vweird.f32 %v326
    %vm344 = vweird.f32 %v337
    %vm345 = vmor %vm343, %vm344
    %v346 = vsel %vm345, %v337, %v342
    %v347 = vmul.f32 %v323, %v336
    %v348 = vmul.f32 %v324, %v346
    %349 = vset.pattern.permute.xlu0 1
    %350 = vperm.xlu0 %349, %v76
    %v351 = vpop.permute.xlu0 %350
    %353 = vset.pattern.permute.xlu0 1
    %354 = vperm.xlu0 %353, %v77
    %v355 = vpop.permute.xlu0 %354
    %v357 = vmul.f32 %v347, %v351
    %v358 = vmul.f32 %v348, %v355
    %359 = vset.pattern.permute.xlu0 2
    %360 = vperm.xlu0 %359, %v76
    %v361 = vpop.permute.xlu0 %360
    %363 = vset.pattern.permute.xlu0 2
    %364 = vperm.xlu0 %363, %v77
    %v365 = vpop.permute.xlu0 %364
    %v367 = vadd.f32 %v357, %v361
    %v368 = vadd.f32 %v358, %v365
    %v369 = vmin.f32 %v367, 20.0
    %v370 = vmin.f32 %v368, 20.0
    %v371 = vmul.f32 %v369, 1.442695
    %v372 = vpow.pop %v371
    %v373 = vmul.f32 %v370, 1.442695
    %v374 = vpow.pop %v373
    %v375 = vadd.f32 %v372, 2.0
    %v376 = vadd.f32 %v374, 2.0
    %v377 = vmul.f32 %v372, %v375
    %v378 = vmul.f32 %v374, %v376
    %v379 = vmul.f32 %v367, %v377
    %v380 = vmul.f32 %v368, %v378
    %v381 = vadd.f32 %v377, 2.0
    %v382 = vadd.f32 %v378, 2.0
    %v383 = vrcp.pop %v381
    %v384 = vrcp.pop %v382
    %v385 = vmul.f32 %v379, %v383
    %v386 = vmul.f32 %v380, %v384
    %vm387 = vcmp.gt.f32.partialorder %v367, 20.0
    %vm388 = vcmp.gt.f32.partialorder %v368, 20.0
    %v389 = vsel %vm387, %v367, %v385
    %v390 = vsel %vm388, %v368, %v386
    %v391 = vld [vmem:[%s1] sm:$0xff]
    %v392 = vmin.f32 %v391, 20.0
    %v393 = vmul.f32 %v392, 1.442695
    %v394 = vpow.pop %v393
    %v395 = vadd.f32 %v394, 2.0
    %v396 = vmul.f32 %v394, %v395
    %v397 = vmul.f32 %v391, %v396
    %v398 = vadd.f32 %v396, 2.0
    %v399 = vrcp.pop %v398
    %v400 = vmul.f32 %v397, %v399
    %vm401 = vcmp.gt.f32.partialorder %v391, 20.0
    %v402 = vsel %vm401, %v391, %v400
    %v404 = vsel %vm141, %v72, 0
    %v407 = vsel %vm141, %v73, 0
    %v410 = vsel %vm141, %v402, 0
    %412 = vmatpush.xpose.msra.mxu0 0.0
    %413 = vmatpush.xpose.msra.mxu0 0.0
    %414 = vmatpush.xpose.msra.mxu0 0.0
    %415 = vmatpush.xpose.msra.mxu0 0.0
    %416 = vmatpush.xpose.msra.mxu0 0.0
    %417 = vmatpush.xpose.msra.mxu0 0.0
    %418 = vmatpush.xpose.msra.mxu0 0.0
    %419 = vmatpush.xpose.msra.mxu0 0.0
    %420 = vmatpush.xpose.msra.mxu0 0.0
    %421 = vmatpush.xpose.msra.mxu0 0.0
    %422 = vmatpush.xpose.msra.mxu0 0.0
    %423 = vmatpush.xpose.msra.mxu0 0.0
    %424 = vmatpush.xpose.msra.mxu0 0.0
    %425 = vmatpush.xpose.msra.mxu0 0.0
    %426 = vmatpush.xpose.msra.mxu0 0.0
    %427 = vmatpush.xpose.msra.mxu0 %v410
    %428 = vmatmul.f32.gmra.mxu0 %v404
    %v429 = vpop.f32.mrf.mxu0
    %v430 = vadd.f32 0.0, %v429
    %431 = vmatmul.f32.gmra.mxu0 %v407
    %v432 = vpop.f32.mrf.mxu0
    %v433 = vadd.f32 0.0, %v432
    %434 = vdwg.mxu0
    %vm435 = vcmask 64512
    %v437 = vsel %vm435, %v430, 0
    %v440 = vsel %vm435, %v433, 0
    %442 = vmatpush.msra.mxu0 0.0
    %443 = vmatpush.msra.mxu0 0.0
    %444 = vmatpush.msra.mxu0 0.0
    %445 = vmatpush.msra.mxu0 0.0
    %446 = vmatpush.msra.mxu0 0.0
    %447 = vmatpush.msra.mxu0 0.0
    %448 = vmatpush.msra.mxu0 0.0
    %449 = vmatpush.msra.mxu0 0.0
    %450 = vmatpush.msra.mxu0 0.0
    %451 = vmatpush.msra.mxu0 0.0
    %452 = vmatpush.msra.mxu0 0.0
    %453 = vmatpush.msra.mxu0 0.0
    %454 = vmatpush.msra.mxu0 0.0
    %455 = vmatpush.msra.mxu0 0.0
    %456 = vmatpush.msra.mxu0 0.0
    %457 = vmatpush.msra.mxu0 %v94
    %458 = vmatmul.f32.gmra.mxu0 %v437
    %v459 = vpop.f32.mrf.mxu0
    %v460 = vadd.f32 0.0, %v459
    %461 = vmatmul.f32.gmra.mxu0 %v440
    %v462 = vpop.f32.mrf.mxu0
    %v463 = vadd.f32 0.0, %v462
    %464 = vdwg.mxu0
    %v465 = vadd.f32 %v389, %v460
    %v466 = vadd.f32 %v390, %v463
    %467 = vset.pattern.permute.xlu0 6
    %468 = vperm.xlu0 %467, %v76
    %v469 = vpop.permute.xlu0 %468
    %471 = vset.pattern.permute.xlu0 6
    %472 = vperm.xlu0 %471, %v77
    %v473 = vpop.permute.xlu0 %472
    %v475 = vadd.f32 %v465, %v469
    %v476 = vadd.f32 %v466, %v473
    %477 = vrot.lane.b32.xlu0 %v475, 2
    %v478 = vpop.permute.xlu0 %477
    %479 = vrot.lane.b32.xlu0 %v476, 2
    %v480 = vpop.permute.xlu0 %479
    %v481 = vmul.f32 %v478, %v155
    %v482 = vmul.f32 %v480, %v155
    %483 = vrot.lane.b32.xlu0 %v475, 1
    %v484 = vpop.permute.xlu0 %483
    %485 = vrot.lane.b32.xlu0 %v476, 1
    %v486 = vpop.permute.xlu0 %485
    %v487 = vmul.f32 %v484, %v159
    %v488 = vmul.f32 %v486, %v159
    %489 = vrot.lane.b32.xlu0 %v475, 127
    %v490 = vpop.permute.xlu0 %489
    %491 = vrot.lane.b32.xlu0 %v476, 127
    %v492 = vpop.permute.xlu0 %491
    %v493 = vmul.f32 %v490, %v163
    %v494 = vmul.f32 %v492, %v163
    %495 = vrot.lane.b32.xlu0 %v475, 126
    %v496 = vpop.permute.xlu0 %495
    %497 = vrot.lane.b32.xlu0 %v476, 126
    %v498 = vpop.permute.xlu0 %497
    %v499 = vmul.f32 %v496, %v167
    %v500 = vmul.f32 %v498, %v167
    %501 = vset.pattern.permute.xlu0 3
    %502 = vperm.xlu0 %501, %v76
    %v503 = vpop.permute.xlu0 %502
    %505 = vset.pattern.permute.xlu0 3
    %506 = vperm.xlu0 %505, %v77
    %v507 = vpop.permute.xlu0 %506
    %v510 = vsel %vm147, %v70, 0
    %v513 = vsel %vm147, %v71, 0
    %515 = vmatpush.msra.mxu0 0.0
    %516 = vmatpush.msra.mxu0 0.0
    %517 = vmatpush.msra.mxu0 0.0
    %518 = vmatpush.msra.mxu0 0.0
    %519 = vmatpush.msra.mxu0 0.0
    %520 = vmatpush.msra.mxu0 0.0
    %521 = vmatpush.msra.mxu0 %v500
    %522 = vmatpush.msra.mxu0 %v499
    %523 = vmatpush.msra.mxu0 %v494
    %524 = vmatpush.msra.mxu0 %v493
    %525 = vmatpush.msra.mxu0 %v476
    %526 = vmatpush.msra.mxu0 %v475
    %527 = vmatpush.msra.mxu0 %v488
    %528 = vmatpush.msra.mxu0 %v487
    %529 = vmatpush.msra.mxu0 %v482
    %530 = vmatpush.msra.mxu0 %v481
    %531 = vmatmul.f32.gmra.mxu0 %v510
    %v532 = vpop.f32.mrf.mxu0
    %v533 = vadd.f32 %v503, %v532
    %534 = vmatmul.f32.gmra.mxu0 %v513
    %v535 = vpop.f32.mrf.mxu0
    %v536 = vadd.f32 %v507, %v535
    %537 = vdwg.mxu0
    %v538 = vmul.f32 %v533, %v533
    %v539 = vmul.f32 %v536, %v536
    %540 = vmatpush.msra.mxu0 %v93
    %541 = vmatpush.msra.mxu0 %v92
    %542 = vmatpush.msra.mxu0 %v91
    %543 = vmatpush.msra.mxu0 %v90
    %544 = vmatpush.msra.mxu0 %v89
    %545 = vmatpush.msra.mxu0 %v88
    %546 = vmatpush.msra.mxu0 %v87
    %547 = vmatpush.msra.mxu0 %v86
    %548 = vmatpush.msra.mxu0 %v85
    %549 = vmatpush.msra.mxu0 %v84
    %550 = vmatpush.msra.mxu0 %v83
    %551 = vmatpush.msra.mxu0 %v82
    %552 = vmatpush.msra.mxu0 %v81
    %553 = vmatpush.msra.mxu0 %v80
    %554 = vmatpush.msra.mxu0 %v79
    %555 = vmatpush.msra.mxu0 %v78
    %556 = vmatmul.f32.gmra.mxu0 %v533
    %v557 = vpop.f32.mrf.mxu0
    %v558 = vadd.f32 0.0, %v557
    %559 = vmatmul.f32.gmra.mxu0 %v536
    %v560 = vpop.f32.mrf.mxu0
    %v561 = vadd.f32 0.0, %v560
    %562 = vmatmul.f32.gmra.mxu0 %v538
    %v563 = vpop.f32.mrf.mxu0
    %v564 = vadd.f32 0.0, %v563
    %565 = vmatmul.f32.gmra.mxu0 %v539
    %v566 = vpop.f32.mrf.mxu0
    %v567 = vadd.f32 0.0, %v566
    %568 = vdwg.mxu0
    %v569 = vsel %vm240, %v558, 0.0
    %v570 = vrot.slane %v569, 4
    %v571 = vadd.f32 %v569, %v570
    %v572 = vrot.slane %v571, 2
    %v573 = vadd.f32 %v571, %v572
    %v574 = vrot.slane %v573, 1
    %v575 = vadd.f32 %v573, %v574
    %v577 = vrot.slane %v558, 4
    %v579 = vsel %vm240, %v577, 0.0
    %v580 = vrot.slane %v579, 4
    %v581 = vadd.f32 %v579, %v580
    %v582 = vrot.slane %v581, 2
    %v583 = vadd.f32 %v581, %v582
    %v584 = vrot.slane %v583, 1
    %v585 = vadd.f32 %v583, %v584
    %v586 = vsel %vm240, %v561, 0.0
    %v587 = vrot.slane %v586, 4
    %v588 = vadd.f32 %v586, %v587
    %v589 = vrot.slane %v588, 2
    %v590 = vadd.f32 %v588, %v589
    %v591 = vrot.slane %v590, 1
    %v592 = vadd.f32 %v590, %v591
    %v594 = vrot.slane %v561, 4
    %v596 = vsel %vm240, %v594, 0.0
    %v597 = vrot.slane %v596, 4
    %v598 = vadd.f32 %v596, %v597
    %v599 = vrot.slane %v598, 2
    %v600 = vadd.f32 %v598, %v599
    %v601 = vrot.slane %v600, 1
    %v602 = vadd.f32 %v600, %v601
    %v603 = vsel %vm240, %v564, 0.0
    %v604 = vrot.slane %v603, 4
    %v605 = vadd.f32 %v603, %v604
    %v606 = vrot.slane %v605, 2
    %v607 = vadd.f32 %v605, %v606
    %v608 = vrot.slane %v607, 1
    %v609 = vadd.f32 %v607, %v608
    %v611 = vrot.slane %v564, 4
    %v613 = vsel %vm240, %v611, 0.0
    %v614 = vrot.slane %v613, 4
    %v615 = vadd.f32 %v613, %v614
    %v616 = vrot.slane %v615, 2
    %v617 = vadd.f32 %v615, %v616
    %v618 = vrot.slane %v617, 1
    %v619 = vadd.f32 %v617, %v618
    %v620 = vsel %vm240, %v567, 0.0
    %v621 = vrot.slane %v620, 4
    %v622 = vadd.f32 %v620, %v621
    %v623 = vrot.slane %v622, 2
    %v624 = vadd.f32 %v622, %v623
    %v625 = vrot.slane %v624, 1
    %v626 = vadd.f32 %v624, %v625
    %v628 = vrot.slane %v567, 4
    %v630 = vsel %vm240, %v628, 0.0
    %v631 = vrot.slane %v630, 4
    %v632 = vadd.f32 %v630, %v631
    %v633 = vrot.slane %v632, 2
    %v634 = vadd.f32 %v632, %v633
    %v635 = vrot.slane %v634, 1
    %v636 = vadd.f32 %v634, %v635
    %v637 = vsel %vm240, %v575, %v585
    %v638 = vsel %vm240, %v592, %v602
    %v639 = vsel %vm240, %v609, %v619
    %v640 = vsel %vm240, %v626, %v636
    %v641 = vmul.f32 %v637, 0.015625
    %v642 = vmul.f32 %v638, 0.015625
    %v643 = vmul.f32 %v639, 0.015625
    %v644 = vmul.f32 %v640, 0.015625
    %v645 = vmul.f32 %v641, %v641
    %v646 = vmul.f32 %v642, %v642
    %v647 = vsub.f32 %v643, %v645
    %v648 = vsub.f32 %v644, %v646
    %v649 = vmax.f32 %v647, 0.0
    %v650 = vmax.f32 %v648, 0.0
    %v651 = vsub.f32 %v533, %v641
    %v652 = vsub.f32 %v536, %v642
    %v653 = vadd.f32 %v649, 1e-05
    %v654 = vadd.f32 %v650, 1e-05
    %v655 = vrsqrt.pop %v653
    %v656 = vmul.f32 %v655, %v653
    %v657 = vmul.f32 %v656, %v655
    %v658 = vmul.f32 0.5, %v657
    %v659 = vsub.f32 1.5, %v658
    %v660 = vmul.f32 %v655, %v659
    %vm661 = vweird.f32 %v653
    %vm662 = vweird.f32 %v655
    %vm663 = vmor %vm661, %vm662
    %v664 = vsel %vm663, %v655, %v660
    %v665 = vrsqrt.pop %v654
    %v666 = vmul.f32 %v665, %v654
    %v667 = vmul.f32 %v666, %v665
    %v668 = vmul.f32 0.5, %v667
    %v669 = vsub.f32 1.5, %v668
    %v670 = vmul.f32 %v665, %v669
    %vm671 = vweird.f32 %v654
    %vm672 = vweird.f32 %v665
    %vm673 = vmor %vm671, %vm672
    %v674 = vsel %vm673, %v665, %v670
    %v675 = vmul.f32 %v651, %v664
    %v676 = vmul.f32 %v652, %v674
    %677 = vset.pattern.permute.xlu0 4
    %678 = vperm.xlu0 %677, %v76
    %v679 = vpop.permute.xlu0 %678
    %681 = vset.pattern.permute.xlu0 4
    %682 = vperm.xlu0 %681, %v77
    %v683 = vpop.permute.xlu0 %682
    %v685 = vmul.f32 %v675, %v679
    %v686 = vmul.f32 %v676, %v683
    %687 = vset.pattern.permute.xlu0 5
    %688 = vperm.xlu0 %687, %v76
    %v689 = vpop.permute.xlu0 %688
    %691 = vset.pattern.permute.xlu0 5
    %692 = vperm.xlu0 %691, %v77
    %v693 = vpop.permute.xlu0 %692
    %v695 = vadd.f32 %v685, %v689
    %v696 = vadd.f32 %v686, %v693
    %v697 = vmin.f32 %v695, 20.0
    %v698 = vmin.f32 %v696, 20.0
    %v699 = vmul.f32 %v697, 1.442695
    %v700 = vpow.pop %v699
    %v701 = vmul.f32 %v698, 1.442695
    %v702 = vpow.pop %v701
    %v703 = vadd.f32 %v700, 2.0
    %v704 = vadd.f32 %v702, 2.0
    %v705 = vmul.f32 %v700, %v703
    %v706 = vmul.f32 %v702, %v704
    %v707 = vmul.f32 %v695, %v705
    %v708 = vmul.f32 %v696, %v706
    %v709 = vadd.f32 %v705, 2.0
    %v710 = vadd.f32 %v706, 2.0
    %v711 = vrcp.pop %v709
    %v712 = vrcp.pop %v710
    %v713 = vmul.f32 %v707, %v711
    %v714 = vmul.f32 %v708, %v712
    %vm715 = vcmp.gt.f32.partialorder %v695, 20.0
    %vm716 = vcmp.gt.f32.partialorder %v696, 20.0
    %v717 = vsel %vm715, %v695, %v713
    %v718 = vsel %vm716, %v696, %v714
    %v720 = vsel %vm435, %v74, 0
    %v723 = vsel %vm435, %v75, 0
    %725 = vmatpush.msra.mxu0 0.0
    %726 = vmatpush.msra.mxu0 0.0
    %727 = vmatpush.msra.mxu0 0.0
    %728 = vmatpush.msra.mxu0 0.0
    %729 = vmatpush.msra.mxu0 0.0
    %730 = vmatpush.msra.mxu0 0.0
    %731 = vmatpush.msra.mxu0 0.0
    %732 = vmatpush.msra.mxu0 0.0
    %733 = vmatpush.msra.mxu0 0.0
    %734 = vmatpush.msra.mxu0 0.0
    %735 = vmatpush.msra.mxu0 0.0
    %736 = vmatpush.msra.mxu0 0.0
    %737 = vmatpush.msra.mxu0 0.0
    %738 = vmatpush.msra.mxu0 0.0
    %739 = vmatpush.msra.mxu0 0.0
    %740 = vmatpush.msra.mxu0 %v152
    %741 = vmatmul.f32.gmra.mxu0 %v720
    %v742 = vpop.f32.mrf.mxu0
    %v743 = vadd.f32 0.0, %v742
    %744 = vmatmul.f32.gmra.mxu0 %v723
    %v745 = vpop.f32.mrf.mxu0
    %v746 = vadd.f32 0.0, %v745
    %747 = vdwg.mxu0
    %v748 = vadd.f32 %v717, %v743
    %v749 = vadd.f32 %v718, %v746
    %750 = vset.pattern.permute.xlu0 7
    %751 = vperm.xlu0 %750, %v76
    %v752 = vpop.permute.xlu0 %751
    %754 = vset.pattern.permute.xlu0 7
    %755 = vperm.xlu0 %754, %v77
    %v756 = vpop.permute.xlu0 %755
    %v758 = vadd.f32 %v748, %v752
    %v759 = vadd.f32 %v749, %v756
    %760 = vst.msk [vmem:[#allocation8] sm:$0xff] %vm139, %v758
    %761 = vst.msk [vmem:[#allocation8 + $0x8] sm:$0xff] %vm139, %v759
    %764 = vrot.lane.b32.xlu0 %v758, 112
    %v765 = vpop.permute.xlu0 %764
    %766 = vrot.lane.b32.xlu0 %v759, 112
    %v767 = vpop.permute.xlu0 %766
    %s770 = scalar_lea.vmem [#allocation8], 16
    %771 = vst.msk [vmem:[%s770] sm:$0xff] %vm139, %v765
    %772 = vst.msk [vmem:[%s770 + $0x8] sm:$0xff] %vm139, %v767
    %773 = vrot.lane.b32.xlu0 %v758, 96
    %v774 = vpop.permute.xlu0 %773
    %775 = vrot.lane.b32.xlu0 %v759, 96
    %v776 = vpop.permute.xlu0 %775
    %s779 = scalar_lea.vmem [#allocation8], 32
    %780 = vst.msk [vmem:[%s779] sm:$0xff] %vm139, %v774
    %781 = vst.msk [vmem:[%s779 + $0x8] sm:$0xff] %vm139, %v776
    %782 = vrot.lane.b32.xlu0 %v758, 80
    %v783 = vpop.permute.xlu0 %782
    %784 = vrot.lane.b32.xlu0 %v759, 80
    %v785 = vpop.permute.xlu0 %784
    %s788 = scalar_lea.vmem [#allocation8], 48
    %789 = vst.msk [vmem:[%s788] sm:$0xff] %vm139, %v783
    %790 = vst.msk [vmem:[%s788 + $0x8] sm:$0xff] %vm139, %v785
    %791 = vrot.lane.b32.xlu0 %v758, 64
    %v792 = vpop.permute.xlu0 %791
    %793 = vrot.lane.b32.xlu0 %v759, 64
    %v794 = vpop.permute.xlu0 %793
    %s797 = scalar_lea.vmem [#allocation8], 64
    %798 = vst.msk [vmem:[%s797] sm:$0xff] %vm139, %v792
    %799 = vst.msk [vmem:[%s797 + $0x8] sm:$0xff] %vm139, %v794
    %800 = vrot.lane.b32.xlu0 %v758, 48
    %v801 = vpop.permute.xlu0 %800
    %802 = vrot.lane.b32.xlu0 %v759, 48
    %v803 = vpop.permute.xlu0 %802
    %s806 = scalar_lea.vmem [#allocation8], 80
    %807 = vst.msk [vmem:[%s806] sm:$0xff] %vm139, %v801
    %808 = vst.msk [vmem:[%s806 + $0x8] sm:$0xff] %vm139, %v803
    %809 = vrot.lane.b32.xlu0 %v758, 32
    %v810 = vpop.permute.xlu0 %809
    %811 = vrot.lane.b32.xlu0 %v759, 32
    %v812 = vpop.permute.xlu0 %811
    %s815 = scalar_lea.vmem [#allocation8], 96
    %816 = vst.msk [vmem:[%s815] sm:$0xff] %vm139, %v810
    %817 = vst.msk [vmem:[%s815 + $0x8] sm:$0xff] %vm139, %v812
    %818 = vrot.lane.b32.xlu0 %v758, 16
    %v819 = vpop.permute.xlu0 %818
    %820 = vrot.lane.b32.xlu0 %v759, 16
    %v821 = vpop.permute.xlu0 %820
    %s824 = scalar_lea.vmem [#allocation8], 112
    %825 = vst.msk [vmem:[%s824] sm:$0xff] %vm139, %v819
    %826 = vst.msk [vmem:[%s824 + $0x8] sm:$0xff] %vm139, %v821
    // Predicated region
    $region34: #{tpu_custom_call.1} parent=1 // pred_check
      _
    $region35: #{tpu_custom_call.1} parent=1 // pred_check_branch
      %828 = sbr.rel (0) target = $region37
    $region36: #{tpu_custom_call.1} parent=1 // pred_region
      %830 = vsyncadd [#allocation4], 0
      %s831 = sshll.u32 [#allocation8], 4
      %s832 = int_to_ptr.vmem [resolvable:$true] %s831
      %s833 = sshll.u32 %s5, 4
      %s834 = int_to_ptr.hbm [resolvable:$true] %s833
      %839 = dma.vmem_to_hbm [thread:$0]  %s832, 2048, %s834, [#allocation4], 128, 128, 8
    $region37: #{tpu_custom_call.1} parent=1 // pred_fallthru
      _
    // Predicated region
    $region38: #{tpu_custom_call.1} parent=1 // pred_check
      _
    $region39: #{tpu_custom_call.1} parent=1 // pred_check_branch
      %841 = sbr.rel (0) target = $region41
    $region40: #{tpu_custom_call.1} parent=1 // pred_region
      %843 = dma.done [#allocation4], 2048
    $region41: #{tpu_custom_call.1} parent=1 // pred_fallthru
      _
    %844 = vsyncpa [#allocation3], 1
    %845 = vsyncpa [#allocation6], 1
    %846 = vsyncpa [#allocation4], 1

</llo_original>
